<compile_context>
chip_gen: v6e
topology: v6e:2x2x1
jax: 0.10.0
libtpu: 0.0.40
codegen_flags: <defaults>
</compile_context>

<pallas_src>
import functools

import jax
import jax.numpy as jnp
from jax.experimental import pallas as pl
from jax.experimental.pallas import tpu as pltpu


# ------------------------------ Pallas kernel --------------------------------

def _shift_tap(v, flat_shift, idx, s, bound):
    """Shift v by `flat_shift` along the flat H*W lane axis, zero outside range.

    out[:, f] = v[:, f + flat_shift]  if 0 <= idx[f] + s < bound  else 0
    (jnp.roll convention: roll(x, r)[f] = x[(f - r) mod L], so r = -flat_shift.)
    """
    hw = v.shape[-1]
    rolled = pltpu.roll(v, (-flat_shift) % hw, axis=1)
    mask = (idx >= -s) & (idx < bound - s)
    return jnp.where(mask, rolled, 0.0)


def _gcn_kernel(x_ref, idx_ref, w1_ref, b1_ref, w2_ref, b2_ref, o_ref,
                *, ks, H, W):
    pad = ks // 2
    x = x_ref[0]                     # (C_in, H*W)  f32
    idx = idx_ref[...]               # (2, H*W)     i32: row 0 = h, row 1 = w
    h_idx = idx[0:1, :]
    w_idx = idx[1:2, :]

    # ---- Stage 1: merged (ks,1) convs of both branches, along H -------------
    y = jnp.dot(w1_ref[pad], x, preferred_element_type=jnp.float32)
    for k in range(ks):
        s = k - pad
        if s == 0:
            continue
        xk = _shift_tap(x, s * W, h_idx, s, H)
        y = y + jnp.dot(w1_ref[k], xk, preferred_element_type=jnp.float32)
    y = y + b1_ref[...]              # (2*C_out, H*W); bias added exactly once

    # ---- Stage 2: merged (1,ks) convs along W + residual add ----------------
    acc = jnp.dot(w2_ref[pad], y, preferred_element_type=jnp.float32)
    for j in range(ks):
        s = j - pad
        if s == 0:
            continue
        yj = _shift_tap(y, s, w_idx, s, W)
        acc = acc + jnp.dot(w2_ref[j], yj, preferred_element_type=jnp.float32)

    o_ref[0] = (acc + b2_ref[...]).astype(o_ref.dtype)


# ------------------------------ wrapper ---------------------------------------

def gcn_forward(x, params, *, ks):
    N, C_in, H, W = x.shape
    C_out = params["conv1_1"]["w"].shape[0]
    HW = H * W

    x_flat = x.reshape(N, C_in, HW).astype(jnp.float32)

    # Stage-1 weights of both branches merged along C_out -> (ks, 2*C_out, C_in).
    w1 = jnp.concatenate([params["conv1_1"]["w"][:, :, :, 0],
                          params["conv2_1"]["w"][:, :, :, 0]], axis=0)
    w1 = jnp.transpose(w1, (2, 0, 1))
    b1 = jnp.concatenate([params["conv1_1"]["b"],
                          params["conv2_1"]["b"]])[:, None]           # (2*C_out, 1)

    # Stage-2 weights merged along the packed input channel -> (ks, C_out, 2*C_out).
    w2 = jnp.concatenate([params["conv1_2"]["w"][:, :, 0, :],
                          params["conv2_2"]["w"][:, :, 0, :]], axis=1)
    w2 = jnp.transpose(w2, (2, 0, 1))
    b2 = (params["conv1_2"]["b"] + params["conv2_2"]["b"])[:, None]   # (C_out, 1)

    # Per-lane (h, w) indices for the zero-padding edge masks (avoids in-kernel div/mod).
    f = jnp.arange(HW, dtype=jnp.int32)
    idx = jnp.stack([f // W, f % W], axis=0)                          # (2, HW)

    kernel = functools.partial(_gcn_kernel, ks=ks, H=H, W=W)
    out = pl.pallas_call(
        kernel,
        out_shape=jax.ShapeDtypeStruct((N, C_out, HW), jnp.float32),
        grid=(N,),
        in_specs=[
            pl.BlockSpec((1, C_in, HW), lambda n: (n, 0, 0)),
            pl.BlockSpec((2, HW), lambda n: (0, 0)),
            pl.BlockSpec((ks, 2 * C_out, C_in), lambda n: (0, 0, 0)),
            pl.BlockSpec((2 * C_out, 1), lambda n: (0, 0)),
            pl.BlockSpec((ks, C_out, 2 * C_out), lambda n: (0, 0, 0)),
            pl.BlockSpec((C_out, 1), lambda n: (0, 0)),
        ],
        out_specs=pl.BlockSpec((1, C_out, HW), lambda n: (n, 0, 0)),
        compiler_params=pltpu.CompilerParams(
            dimension_semantics=("parallel",)),
    )(x_flat, idx, w1, b1, w2, b2)
    return out.reshape(N, C_out, H, W)


# ------------------------------ Reference (lax conv) --------------------------

def _ref_conv(x, w, b, pad_hw):
    y = jax.lax.conv_general_dilated(
        x, w, window_strides=(1, 1),
        padding=[(pad_hw[0], pad_hw[0]), (pad_hw[1], pad_hw[1])],
        dimension_numbers=("NCHW", "OIHW", "NCHW"))
    return y + b[None, :, None, None]


def gcn_reference(x, params, *, ks):
    p = ks // 2
    x1 = _ref_conv(x, params["conv1_1"]["w"], params["conv1_1"]["b"], (p, 0))
    x1 = _ref_conv(x1, params["conv1_2"]["w"], params["conv1_2"]["b"], (0, p))
    x2 = _ref_conv(x, params["conv2_1"]["w"], params["conv2_1"]["b"], (p, 0))
    x2 = _ref_conv(x2, params["conv2_2"]["w"], params["conv2_2"]["b"], (0, p))
    return x2 + x1


# ------------------------------ Param init ------------------------------------

def _init_conv(key, c_out, c_in, kh, kw):
    kw_key, kb_key = jax.random.split(key)
    fan_in = c_in * kh * kw
    std = (2.0 / fan_in) ** 0.5                       # kaiming_normal_ (fan_in, relu)
    w = std * jax.random.normal(kw_key, (c_out, c_in, kh, kw), jnp.float32)
    bound = 1.0 / (fan_in ** 0.5)                     # PyTorch Conv2d default bias init
    b = jax.random.uniform(kb_key, (c_out,), jnp.float32, -bound, bound)
    return {"w": w, "b": b}


if __name__ == "__main__":
    N, C_in, C_out, H, W, KS = 2, 16, 8, 16, 16, 7

    key = jax.random.PRNGKey(0)
    k11, k12, k21, k22, kx = jax.random.split(key, 5)
    params = {
        "conv1_1": _init_conv(k11, C_out, C_in, KS, 1),
        "conv1_2": _init_conv(k12, C_out, C_out, 1, KS),
        "conv2_1": _init_conv(k21, C_out, C_in, KS, 1),
        "conv2_2": _init_conv(k22, C_out, C_out, 1, KS),
    }
    x = jax.random.normal(kx, (N, C_in, H, W), jnp.float32)

    fwd = jax.jit(functools.partial(gcn_forward, ks=KS))
    out = fwd(x, params)
    jax.block_until_ready(out)

    ref = gcn_reference(x, params, ks=KS)
    assert out.shape == (N, C_out, H, W), out.shape
    err = float(jnp.max(jnp.abs(out - ref)))
    assert jnp.allclose(out, ref, atol=2e-4, rtol=2e-4), err
    print("KERNEL_OK")
</pallas_src>

<mosaic_0001>
module attributes {stable_mosaic.version = 11 : i64} {
  func.func @_gcn_kernel(%arg0: i32, %arg1: memref<1x16x256xf32, #tpu.memory_space<vmem>>, %arg2: memref<2x256xi32, #tpu.memory_space<vmem>>, %arg3: memref<7x16x16xf32, #tpu.memory_space<vmem>>, %arg4: memref<16x1xf32, #tpu.memory_space<vmem>>, %arg5: memref<7x8x16xf32, #tpu.memory_space<vmem>>, %arg6: memref<8x1xf32, #tpu.memory_space<vmem>>, %arg7: memref<1x8x256xf32, #tpu.memory_space<vmem>>) attributes {dimension_semantics = [#tpu.dimension_semantics<parallel>], iteration_bounds = array<i64: 2>, scalar_prefetch = 0 : i64, scratch_operands = 0 : i64, tpu.core_type = #tpu.core_type<tc>, window_params = [{transform_indices = @transform_0, window_bounds = array<i64: 1, 16, 256>}, {pipeline_mode = #tpu.pipeline_mode<synchronous>, transform_indices = @transform_1, window_bounds = array<i64: 2, 256>}, {pipeline_mode = #tpu.pipeline_mode<synchronous>, transform_indices = @transform_2, window_bounds = array<i64: 7, 16, 16>}, {pipeline_mode = #tpu.pipeline_mode<synchronous>, transform_indices = @transform_3, window_bounds = array<i64: 16, 1>}, {pipeline_mode = #tpu.pipeline_mode<synchronous>, transform_indices = @transform_4, window_bounds = array<i64: 7, 8, 16>}, {pipeline_mode = #tpu.pipeline_mode<synchronous>, transform_indices = @transform_5, window_bounds = array<i64: 8, 1>}, {transform_indices = @transform_6, window_bounds = array<i64: 1, 8, 256>}]} {
    %c0 = arith.constant 0 : index
    %c0_0 = arith.constant 0 : index
    %c0_1 = arith.constant 0 : index
    %0 = vector.load %arg1[%c0, %c0_0, %c0_1] : memref<1x16x256xf32, #tpu.memory_space<vmem>>, vector<1x16x256xf32>
    %1 = vector.shape_cast %0 : vector<1x16x256xf32> to vector<16x256xf32>
    %c0_2 = arith.constant 0 : index
    %c0_3 = arith.constant 0 : index
    %2 = vector.load %arg2[%c0_2, %c0_3] : memref<2x256xi32, #tpu.memory_space<vmem>>, vector<2x256xi32>
    %3 = vector.extract_strided_slice %2 {offsets = [0, 0], sizes = [1, 256], strides = [1, 1]} : vector<2x256xi32> to vector<1x256xi32>
    %4 = vector.extract_strided_slice %2 {offsets = [1, 0], sizes = [1, 256], strides = [1, 1]} : vector<2x256xi32> to vector<1x256xi32>
    %c3 = arith.constant 3 : index
    %c0_4 = arith.constant 0 : index
    %c0_5 = arith.constant 0 : index
    %5 = vector.load %arg3[%c3, %c0_4, %c0_5] : memref<7x16x16xf32, #tpu.memory_space<vmem>>, vector<1x16x16xf32>
    %6 = vector.shape_cast %5 : vector<1x16x16xf32> to vector<16x16xf32>
    %cst = arith.constant dense<0.000000e+00> : vector<16x256xf32>
    %7 = tpu.matmul %6, %1, %cst {dimension_numbers = #tpu.dot_dimension_numbers<[1], [0], [0], [1], [0, 0, 1, 1], [], []>} : vector<16x16xf32>, vector<16x256xf32>, vector<16x256xf32> -> vector<16x256xf32>
    %c48_i32 = arith.constant 48 : i32
    %8 = tpu.dynamic_rotate %1 by %c48_i32 dim 1 : vector<16x256xf32>, i32 -> vector<16x256xf32>
    %c3_i32 = arith.constant 3 : i32
    %9 = vector.broadcast %c3_i32 : i32 to vector<1x256xi32>
    %10 = arith.cmpi sge, %3, %9 : vector<1x256xi32>
    %c19_i32 = arith.constant 19 : i32
    %11 = vector.broadcast %c19_i32 : i32 to vector<1x256xi32>
    %12 = arith.cmpi slt, %3, %11 : vector<1x256xi32>
    %13 = arith.andi %10, %12 : vector<1x256xi1>
    %cst_6 = arith.constant 0.000000e+00 : f32
    %14 = vector.shape_cast %13 : vector<1x256xi1> to vector<1x256xi1>
    %15 = vector.broadcast %14 : vector<1x256xi1> to vector<16x256xi1>
    %16 = vector.broadcast %cst_6 : f32 to vector<16x256xf32>
    %17 = arith.select %15, %8, %16 : vector<16x256xi1>, vector<16x256xf32>
    %c0_7 = arith.constant 0 : index
    %c0_8 = arith.constant 0 : index
    %c0_9 = arith.constant 0 : index
    %18 = vector.load %arg3[%c0_7, %c0_8, %c0_9] : memref<7x16x16xf32, #tpu.memory_space<vmem>>, vector<1x16x16xf32>
    %19 = vector.shape_cast %18 : vector<1x16x16xf32> to vector<16x16xf32>
    %cst_10 = arith.constant dense<0.000000e+00> : vector<16x256xf32>
    %20 = tpu.matmul %19, %17, %cst_10 {dimension_numbers = #tpu.dot_dimension_numbers<[1], [0], [0], [1], [0, 0, 1, 1], [], []>} : vector<16x16xf32>, vector<16x256xf32>, vector<16x256xf32> -> vector<16x256xf32>
    %21 = arith.addf %7, %20 : vector<16x256xf32>
    %c32_i32 = arith.constant 32 : i32
    %22 = tpu.dynamic_rotate %1 by %c32_i32 dim 1 : vector<16x256xf32>, i32 -> vector<16x256xf32>
    %c2_i32 = arith.constant 2 : i32
    %23 = vector.broadcast %c2_i32 : i32 to vector<1x256xi32>
    %24 = arith.cmpi sge, %3, %23 : vector<1x256xi32>
    %c18_i32 = arith.constant 18 : i32
    %25 = vector.broadcast %c18_i32 : i32 to vector<1x256xi32>
    %26 = arith.cmpi slt, %3, %25 : vector<1x256xi32>
    %27 = arith.andi %24, %26 : vector<1x256xi1>
    %cst_11 = arith.constant 0.000000e+00 : f32
    %28 = vector.shape_cast %27 : vector<1x256xi1> to vector<1x256xi1>
    %29 = vector.broadcast %28 : vector<1x256xi1> to vector<16x256xi1>
    %30 = vector.broadcast %cst_11 : f32 to vector<16x256xf32>
    %31 = arith.select %29, %22, %30 : vector<16x256xi1>, vector<16x256xf32>
    %c1 = arith.constant 1 : index
    %c0_12 = arith.constant 0 : index
    %c0_13 = arith.constant 0 : index
    %32 = vector.load %arg3[%c1, %c0_12, %c0_13] : memref<7x16x16xf32, #tpu.memory_space<vmem>>, vector<1x16x16xf32>
    %33 = vector.shape_cast %32 : vector<1x16x16xf32> to vector<16x16xf32>
    %cst_14 = arith.constant dense<0.000000e+00> : vector<16x256xf32>
    %34 = tpu.matmul %33, %31, %cst_14 {dimension_numbers = #tpu.dot_dimension_numbers<[1], [0], [0], [1], [0, 0, 1, 1], [], []>} : vector<16x16xf32>, vector<16x256xf32>, vector<16x256xf32> -> vector<16x256xf32>
    %35 = arith.addf %21, %34 : vector<16x256xf32>
    %c16_i32 = arith.constant 16 : i32
    %36 = tpu.dynamic_rotate %1 by %c16_i32 dim 1 : vector<16x256xf32>, i32 -> vector<16x256xf32>
    %c1_i32 = arith.constant 1 : i32
    %37 = vector.broadcast %c1_i32 : i32 to vector<1x256xi32>
    %38 = arith.cmpi sge, %3, %37 : vector<1x256xi32>
    %c17_i32 = arith.constant 17 : i32
    %39 = vector.broadcast %c17_i32 : i32 to vector<1x256xi32>
    %40 = arith.cmpi slt, %3, %39 : vector<1x256xi32>
    %41 = arith.andi %38, %40 : vector<1x256xi1>
    %cst_15 = arith.constant 0.000000e+00 : f32
    %42 = vector.shape_cast %41 : vector<1x256xi1> to vector<1x256xi1>
    %43 = vector.broadcast %42 : vector<1x256xi1> to vector<16x256xi1>
    %44 = vector.broadcast %cst_15 : f32 to vector<16x256xf32>
    %45 = arith.select %43, %36, %44 : vector<16x256xi1>, vector<16x256xf32>
    %c2 = arith.constant 2 : index
    %c0_16 = arith.constant 0 : index
    %c0_17 = arith.constant 0 : index
    %46 = vector.load %arg3[%c2, %c0_16, %c0_17] : memref<7x16x16xf32, #tpu.memory_space<vmem>>, vector<1x16x16xf32>
    %47 = vector.shape_cast %46 : vector<1x16x16xf32> to vector<16x16xf32>
    %cst_18 = arith.constant dense<0.000000e+00> : vector<16x256xf32>
    %48 = tpu.matmul %47, %45, %cst_18 {dimension_numbers = #tpu.dot_dimension_numbers<[1], [0], [0], [1], [0, 0, 1, 1], [], []>} : vector<16x16xf32>, vector<16x256xf32>, vector<16x256xf32> -> vector<16x256xf32>
    %49 = arith.addf %35, %48 : vector<16x256xf32>
    %c240_i32 = arith.constant 240 : i32
    %50 = tpu.dynamic_rotate %1 by %c240_i32 dim 1 : vector<16x256xf32>, i32 -> vector<16x256xf32>
    %c-1_i32 = arith.constant -1 : i32
    %51 = vector.broadcast %c-1_i32 : i32 to vector<1x256xi32>
    %52 = arith.cmpi sge, %3, %51 : vector<1x256xi32>
    %c15_i32 = arith.constant 15 : i32
    %53 = vector.broadcast %c15_i32 : i32 to vector<1x256xi32>
    %54 = arith.cmpi slt, %3, %53 : vector<1x256xi32>
    %55 = arith.andi %52, %54 : vector<1x256xi1>
    %cst_19 = arith.constant 0.000000e+00 : f32
    %56 = vector.shape_cast %55 : vector<1x256xi1> to vector<1x256xi1>
    %57 = vector.broadcast %56 : vector<1x256xi1> to vector<16x256xi1>
    %58 = vector.broadcast %cst_19 : f32 to vector<16x256xf32>
    %59 = arith.select %57, %50, %58 : vector<16x256xi1>, vector<16x256xf32>
    %c4 = arith.constant 4 : index
    %c0_20 = arith.constant 0 : index
    %c0_21 = arith.constant 0 : index
    %60 = vector.load %arg3[%c4, %c0_20, %c0_21] : memref<7x16x16xf32, #tpu.memory_space<vmem>>, vector<1x16x16xf32>
    %61 = vector.shape_cast %60 : vector<1x16x16xf32> to vector<16x16xf32>
    %cst_22 = arith.constant dense<0.000000e+00> : vector<16x256xf32>
    %62 = tpu.matmul %61, %59, %cst_22 {dimension_numbers = #tpu.dot_dimension_numbers<[1], [0], [0], [1], [0, 0, 1, 1], [], []>} : vector<16x16xf32>, vector<16x256xf32>, vector<16x256xf32> -> vector<16x256xf32>
    %63 = arith.addf %49, %62 : vector<16x256xf32>
    %c224_i32 = arith.constant 224 : i32
    %64 = tpu.dynamic_rotate %1 by %c224_i32 dim 1 : vector<16x256xf32>, i32 -> vector<16x256xf32>
    %c-2_i32 = arith.constant -2 : i32
    %65 = vector.broadcast %c-2_i32 : i32 to vector<1x256xi32>
    %66 = arith.cmpi sge, %3, %65 : vector<1x256xi32>
    %c14_i32 = arith.constant 14 : i32
    %67 = vector.broadcast %c14_i32 : i32 to vector<1x256xi32>
    %68 = arith.cmpi slt, %3, %67 : vector<1x256xi32>
    %69 = arith.andi %66, %68 : vector<1x256xi1>
    %cst_23 = arith.constant 0.000000e+00 : f32
    %70 = vector.shape_cast %69 : vector<1x256xi1> to vector<1x256xi1>
    %71 = vector.broadcast %70 : vector<1x256xi1> to vector<16x256xi1>
    %72 = vector.broadcast %cst_23 : f32 to vector<16x256xf32>
    %73 = arith.select %71, %64, %72 : vector<16x256xi1>, vector<16x256xf32>
    %c5 = arith.constant 5 : index
    %c0_24 = arith.constant 0 : index
    %c0_25 = arith.constant 0 : index
    %74 = vector.load %arg3[%c5, %c0_24, %c0_25] : memref<7x16x16xf32, #tpu.memory_space<vmem>>, vector<1x16x16xf32>
    %75 = vector.shape_cast %74 : vector<1x16x16xf32> to vector<16x16xf32>
    %cst_26 = arith.constant dense<0.000000e+00> : vector<16x256xf32>
    %76 = tpu.matmul %75, %73, %cst_26 {dimension_numbers = #tpu.dot_dimension_numbers<[1], [0], [0], [1], [0, 0, 1, 1], [], []>} : vector<16x16xf32>, vector<16x256xf32>, vector<16x256xf32> -> vector<16x256xf32>
    %77 = arith.addf %63, %76 : vector<16x256xf32>
    %c208_i32 = arith.constant 208 : i32
    %78 = tpu.dynamic_rotate %1 by %c208_i32 dim 1 : vector<16x256xf32>, i32 -> vector<16x256xf32>
    %c-3_i32 = arith.constant -3 : i32
    %79 = vector.broadcast %c-3_i32 : i32 to vector<1x256xi32>
    %80 = arith.cmpi sge, %3, %79 : vector<1x256xi32>
    %c13_i32 = arith.constant 13 : i32
    %81 = vector.broadcast %c13_i32 : i32 to vector<1x256xi32>
    %82 = arith.cmpi slt, %3, %81 : vector<1x256xi32>
    %83 = arith.andi %80, %82 : vector<1x256xi1>
    %cst_27 = arith.constant 0.000000e+00 : f32
    %84 = vector.shape_cast %83 : vector<1x256xi1> to vector<1x256xi1>
    %85 = vector.broadcast %84 : vector<1x256xi1> to vector<16x256xi1>
    %86 = vector.broadcast %cst_27 : f32 to vector<16x256xf32>
    %87 = arith.select %85, %78, %86 : vector<16x256xi1>, vector<16x256xf32>
    %c6 = arith.constant 6 : index
    %c0_28 = arith.constant 0 : index
    %c0_29 = arith.constant 0 : index
    %88 = vector.load %arg3[%c6, %c0_28, %c0_29] : memref<7x16x16xf32, #tpu.memory_space<vmem>>, vector<1x16x16xf32>
    %89 = vector.shape_cast %88 : vector<1x16x16xf32> to vector<16x16xf32>
    %cst_30 = arith.constant dense<0.000000e+00> : vector<16x256xf32>
    %90 = tpu.matmul %89, %87, %cst_30 {dimension_numbers = #tpu.dot_dimension_numbers<[1], [0], [0], [1], [0, 0, 1, 1], [], []>} : vector<16x16xf32>, vector<16x256xf32>, vector<16x256xf32> -> vector<16x256xf32>
    %91 = arith.addf %77, %90 : vector<16x256xf32>
    %c0_31 = arith.constant 0 : index
    %c0_32 = arith.constant 0 : index
    %92 = vector.load %arg4[%c0_31, %c0_32] : memref<16x1xf32, #tpu.memory_space<vmem>>, vector<16x1xf32>
    %93 = vector.broadcast %92 : vector<16x1xf32> to vector<16x256xf32>
    %94 = arith.addf %91, %93 : vector<16x256xf32>
    %c3_33 = arith.constant 3 : index
    %c0_34 = arith.constant 0 : index
    %c0_35 = arith.constant 0 : index
    %95 = vector.load %arg5[%c3_33, %c0_34, %c0_35] : memref<7x8x16xf32, #tpu.memory_space<vmem>>, vector<1x8x16xf32>
    %96 = vector.shape_cast %95 : vector<1x8x16xf32> to vector<8x16xf32>
    %cst_36 = arith.constant dense<0.000000e+00> : vector<8x256xf32>
    %97 = tpu.matmul %96, %94, %cst_36 {dimension_numbers = #tpu.dot_dimension_numbers<[1], [0], [0], [1], [0, 0, 1, 1], [], []>} : vector<8x16xf32>, vector<16x256xf32>, vector<8x256xf32> -> vector<8x256xf32>
    %c3_i32_37 = arith.constant 3 : i32
    %98 = tpu.dynamic_rotate %94 by %c3_i32_37 dim 1 : vector<16x256xf32>, i32 -> vector<16x256xf32>
    %c3_i32_38 = arith.constant 3 : i32
    %99 = vector.broadcast %c3_i32_38 : i32 to vector<1x256xi32>
    %100 = arith.cmpi sge, %4, %99 : vector<1x256xi32>
    %c19_i32_39 = arith.constant 19 : i32
    %101 = vector.broadcast %c19_i32_39 : i32 to vector<1x256xi32>
    %102 = arith.cmpi slt, %4, %101 : vector<1x256xi32>
    %103 = arith.andi %100, %102 : vector<1x256xi1>
    %cst_40 = arith.constant 0.000000e+00 : f32
    %104 = vector.shape_cast %103 : vector<1x256xi1> to vector<1x256xi1>
    %105 = vector.broadcast %104 : vector<1x256xi1> to vector<16x256xi1>
    %106 = vector.broadcast %cst_40 : f32 to vector<16x256xf32>
    %107 = arith.select %105, %98, %106 : vector<16x256xi1>, vector<16x256xf32>
    %c0_41 = arith.constant 0 : index
    %c0_42 = arith.constant 0 : index
    %c0_43 = arith.constant 0 : index
    %108 = vector.load %arg5[%c0_41, %c0_42, %c0_43] : memref<7x8x16xf32, #tpu.memory_space<vmem>>, vector<1x8x16xf32>
    %109 = vector.shape_cast %108 : vector<1x8x16xf32> to vector<8x16xf32>
    %cst_44 = arith.constant dense<0.000000e+00> : vector<8x256xf32>
    %110 = tpu.matmul %109, %107, %cst_44 {dimension_numbers = #tpu.dot_dimension_numbers<[1], [0], [0], [1], [0, 0, 1, 1], [], []>} : vector<8x16xf32>, vector<16x256xf32>, vector<8x256xf32> -> vector<8x256xf32>
    %111 = arith.addf %97, %110 : vector<8x256xf32>
    %c2_i32_45 = arith.constant 2 : i32
    %112 = tpu.dynamic_rotate %94 by %c2_i32_45 dim 1 : vector<16x256xf32>, i32 -> vector<16x256xf32>
    %c2_i32_46 = arith.constant 2 : i32
    %113 = vector.broadcast %c2_i32_46 : i32 to vector<1x256xi32>
    %114 = arith.cmpi sge, %4, %113 : vector<1x256xi32>
    %c18_i32_47 = arith.constant 18 : i32
    %115 = vector.broadcast %c18_i32_47 : i32 to vector<1x256xi32>
    %116 = arith.cmpi slt, %4, %115 : vector<1x256xi32>
    %117 = arith.andi %114, %116 : vector<1x256xi1>
    %cst_48 = arith.constant 0.000000e+00 : f32
    %118 = vector.shape_cast %117 : vector<1x256xi1> to vector<1x256xi1>
    %119 = vector.broadcast %118 : vector<1x256xi1> to vector<16x256xi1>
    %120 = vector.broadcast %cst_48 : f32 to vector<16x256xf32>
    %121 = arith.select %119, %112, %120 : vector<16x256xi1>, vector<16x256xf32>
    %c1_49 = arith.constant 1 : index
    %c0_50 = arith.constant 0 : index
    %c0_51 = arith.constant 0 : index
    %122 = vector.load %arg5[%c1_49, %c0_50, %c0_51] : memref<7x8x16xf32, #tpu.memory_space<vmem>>, vector<1x8x16xf32>
    %123 = vector.shape_cast %122 : vector<1x8x16xf32> to vector<8x16xf32>
    %cst_52 = arith.constant dense<0.000000e+00> : vector<8x256xf32>
    %124 = tpu.matmul %123, %121, %cst_52 {dimension_numbers = #tpu.dot_dimension_numbers<[1], [0], [0], [1], [0, 0, 1, 1], [], []>} : vector<8x16xf32>, vector<16x256xf32>, vector<8x256xf32> -> vector<8x256xf32>
    %125 = arith.addf %111, %124 : vector<8x256xf32>
    %c1_i32_53 = arith.constant 1 : i32
    %126 = tpu.dynamic_rotate %94 by %c1_i32_53 dim 1 : vector<16x256xf32>, i32 -> vector<16x256xf32>
    %c1_i32_54 = arith.constant 1 : i32
    %127 = vector.broadcast %c1_i32_54 : i32 to vector<1x256xi32>
    %128 = arith.cmpi sge, %4, %127 : vector<1x256xi32>
    %c17_i32_55 = arith.constant 17 : i32
    %129 = vector.broadcast %c17_i32_55 : i32 to vector<1x256xi32>
    %130 = arith.cmpi slt, %4, %129 : vector<1x256xi32>
    %131 = arith.andi %128, %130 : vector<1x256xi1>
    %cst_56 = arith.constant 0.000000e+00 : f32
    %132 = vector.shape_cast %131 : vector<1x256xi1> to vector<1x256xi1>
    %133 = vector.broadcast %132 : vector<1x256xi1> to vector<16x256xi1>
    %134 = vector.broadcast %cst_56 : f32 to vector<16x256xf32>
    %135 = arith.select %133, %126, %134 : vector<16x256xi1>, vector<16x256xf32>
    %c2_57 = arith.constant 2 : index
    %c0_58 = arith.constant 0 : index
    %c0_59 = arith.constant 0 : index
    %136 = vector.load %arg5[%c2_57, %c0_58, %c0_59] : memref<7x8x16xf32, #tpu.memory_space<vmem>>, vector<1x8x16xf32>
    %137 = vector.shape_cast %136 : vector<1x8x16xf32> to vector<8x16xf32>
    %cst_60 = arith.constant dense<0.000000e+00> : vector<8x256xf32>
    %138 = tpu.matmul %137, %135, %cst_60 {dimension_numbers = #tpu.dot_dimension_numbers<[1], [0], [0], [1], [0, 0, 1, 1], [], []>} : vector<8x16xf32>, vector<16x256xf32>, vector<8x256xf32> -> vector<8x256xf32>
    %139 = arith.addf %125, %138 : vector<8x256xf32>
    %c255_i32 = arith.constant 255 : i32
    %140 = tpu.dynamic_rotate %94 by %c255_i32 dim 1 : vector<16x256xf32>, i32 -> vector<16x256xf32>
    %c-1_i32_61 = arith.constant -1 : i32
    %141 = vector.broadcast %c-1_i32_61 : i32 to vector<1x256xi32>
    %142 = arith.cmpi sge, %4, %141 : vector<1x256xi32>
    %c15_i32_62 = arith.constant 15 : i32
    %143 = vector.broadcast %c15_i32_62 : i32 to vector<1x256xi32>
    %144 = arith.cmpi slt, %4, %143 : vector<1x256xi32>
    %145 = arith.andi %142, %144 : vector<1x256xi1>
    %cst_63 = arith.constant 0.000000e+00 : f32
    %146 = vector.shape_cast %145 : vector<1x256xi1> to vector<1x256xi1>
    %147 = vector.broadcast %146 : vector<1x256xi1> to vector<16x256xi1>
    %148 = vector.broadcast %cst_63 : f32 to vector<16x256xf32>
    %149 = arith.select %147, %140, %148 : vector<16x256xi1>, vector<16x256xf32>
    %c4_64 = arith.constant 4 : index
    %c0_65 = arith.constant 0 : index
    %c0_66 = arith.constant 0 : index
    %150 = vector.load %arg5[%c4_64, %c0_65, %c0_66] : memref<7x8x16xf32, #tpu.memory_space<vmem>>, vector<1x8x16xf32>
    %151 = vector.shape_cast %150 : vector<1x8x16xf32> to vector<8x16xf32>
    %cst_67 = arith.constant dense<0.000000e+00> : vector<8x256xf32>
    %152 = tpu.matmul %151, %149, %cst_67 {dimension_numbers = #tpu.dot_dimension_numbers<[1], [0], [0], [1], [0, 0, 1, 1], [], []>} : vector<8x16xf32>, vector<16x256xf32>, vector<8x256xf32> -> vector<8x256xf32>
    %153 = arith.addf %139, %152 : vector<8x256xf32>
    %c254_i32 = arith.constant 254 : i32
    %154 = tpu.dynamic_rotate %94 by %c254_i32 dim 1 : vector<16x256xf32>, i32 -> vector<16x256xf32>
    %c-2_i32_68 = arith.constant -2 : i32
    %155 = vector.broadcast %c-2_i32_68 : i32 to vector<1x256xi32>
    %156 = arith.cmpi sge, %4, %155 : vector<1x256xi32>
    %c14_i32_69 = arith.constant 14 : i32
    %157 = vector.broadcast %c14_i32_69 : i32 to vector<1x256xi32>
    %158 = arith.cmpi slt, %4, %157 : vector<1x256xi32>
    %159 = arith.andi %156, %158 : vector<1x256xi1>
    %cst_70 = arith.constant 0.000000e+00 : f32
    %160 = vector.shape_cast %159 : vector<1x256xi1> to vector<1x256xi1>
    %161 = vector.broadcast %160 : vector<1x256xi1> to vector<16x256xi1>
    %162 = vector.broadcast %cst_70 : f32 to vector<16x256xf32>
    %163 = arith.select %161, %154, %162 : vector<16x256xi1>, vector<16x256xf32>
    %c5_71 = arith.constant 5 : index
    %c0_72 = arith.constant 0 : index
    %c0_73 = arith.constant 0 : index
    %164 = vector.load %arg5[%c5_71, %c0_72, %c0_73] : memref<7x8x16xf32, #tpu.memory_space<vmem>>, vector<1x8x16xf32>
    %165 = vector.shape_cast %164 : vector<1x8x16xf32> to vector<8x16xf32>
    %cst_74 = arith.constant dense<0.000000e+00> : vector<8x256xf32>
    %166 = tpu.matmul %165, %163, %cst_74 {dimension_numbers = #tpu.dot_dimension_numbers<[1], [0], [0], [1], [0, 0, 1, 1], [], []>} : vector<8x16xf32>, vector<16x256xf32>, vector<8x256xf32> -> vector<8x256xf32>
    %167 = arith.addf %153, %166 : vector<8x256xf32>
    %c253_i32 = arith.constant 253 : i32
    %168 = tpu.dynamic_rotate %94 by %c253_i32 dim 1 : vector<16x256xf32>, i32 -> vector<16x256xf32>
    %c-3_i32_75 = arith.constant -3 : i32
    %169 = vector.broadcast %c-3_i32_75 : i32 to vector<1x256xi32>
    %170 = arith.cmpi sge, %4, %169 : vector<1x256xi32>
    %c13_i32_76 = arith.constant 13 : i32
    %171 = vector.broadcast %c13_i32_76 : i32 to vector<1x256xi32>
    %172 = arith.cmpi slt, %4, %171 : vector<1x256xi32>
    %173 = arith.andi %170, %172 : vector<1x256xi1>
    %cst_77 = arith.constant 0.000000e+00 : f32
    %174 = vector.shape_cast %173 : vector<1x256xi1> to vector<1x256xi1>
    %175 = vector.broadcast %174 : vector<1x256xi1> to vector<16x256xi1>
    %176 = vector.broadcast %cst_77 : f32 to vector<16x256xf32>
    %177 = arith.select %175, %168, %176 : vector<16x256xi1>, vector<16x256xf32>
    %c6_78 = arith.constant 6 : index
    %c0_79 = arith.constant 0 : index
    %c0_80 = arith.constant 0 : index
    %178 = vector.load %arg5[%c6_78, %c0_79, %c0_80] : memref<7x8x16xf32, #tpu.memory_space<vmem>>, vector<1x8x16xf32>
    %179 = vector.shape_cast %178 : vector<1x8x16xf32> to vector<8x16xf32>
    %cst_81 = arith.constant dense<0.000000e+00> : vector<8x256xf32>
    %180 = tpu.matmul %179, %177, %cst_81 {dimension_numbers = #tpu.dot_dimension_numbers<[1], [0], [0], [1], [0, 0, 1, 1], [], []>} : vector<8x16xf32>, vector<16x256xf32>, vector<8x256xf32> -> vector<8x256xf32>
    %181 = arith.addf %167, %180 : vector<8x256xf32>
    %c0_82 = arith.constant 0 : index
    %c0_83 = arith.constant 0 : index
    %182 = vector.load %arg6[%c0_82, %c0_83] : memref<8x1xf32, #tpu.memory_space<vmem>>, vector<8x1xf32>
    %183 = vector.broadcast %182 : vector<8x1xf32> to vector<8x256xf32>
    %184 = arith.addf %181, %183 : vector<8x256xf32>
    %c0_84 = arith.constant 0 : index
    %c0_85 = arith.constant 0 : index
    %c0_86 = arith.constant 0 : index
    %185 = vector.load %arg7[%c0_84, %c0_85, %c0_86] : memref<1x8x256xf32, #tpu.memory_space<vmem>>, vector<1x8x256xf32>
    %186 = vector.shape_cast %185 : vector<1x8x256xf32> to vector<8x256xf32>
    %187 = vector.shape_cast %184 : vector<8x256xf32> to vector<1x8x256xf32>
    tpu.vector_store %arg7[%c0_84, %c0_85, %c0_86], %187 {strides = array<i32>} : memref<1x8x256xf32, #tpu.memory_space<vmem>>, vector<1x8x256xf32>,
    return
  }
  func.func @transform_0(%arg0: i32) -> (i32, i32, i32) {
    %c0_i32 = arith.constant 0 : i32
    %c0_i32_0 = arith.constant 0 : i32
    %c0_i32_1 = arith.constant 0 : i32
    return %arg0, %c0_i32, %c0_i32_0 : i32, i32, i32
  }
  func.func @transform_1(%arg0: i32) -> (i32, i32) {
    %c0_i32 = arith.constant 0 : i32
    %c0_i32_0 = arith.constant 0 : i32
    %c0_i32_1 = arith.constant 0 : i32
    return %c0_i32, %c0_i32_0 : i32, i32
  }
  func.func @transform_2(%arg0: i32) -> (i32, i32, i32) {
    %c0_i32 = arith.constant 0 : i32
    %c0_i32_0 = arith.constant 0 : i32
    %c0_i32_1 = arith.constant 0 : i32
    %c0_i32_2 = arith.constant 0 : i32
    return %c0_i32, %c0_i32_0, %c0_i32_1 : i32, i32, i32
  }
  func.func @transform_3(%arg0: i32) -> (i32, i32) {
    %c0_i32 = arith.constant 0 : i32
    %c0_i32_0 = arith.constant 0 : i32
    %c0_i32_1 = arith.constant 0 : i32
    return %c0_i32, %c0_i32_0 : i32, i32
  }
  func.func @transform_4(%arg0: i32) -> (i32, i32, i32) {
    %c0_i32 = arith.constant 0 : i32
    %c0_i32_0 = arith.constant 0 : i32
    %c0_i32_1 = arith.constant 0 : i32
    %c0_i32_2 = arith.constant 0 : i32
    return %c0_i32, %c0_i32_0, %c0_i32_1 : i32, i32, i32
  }
  func.func @transform_5(%arg0: i32) -> (i32, i32) {
    %c0_i32 = arith.constant 0 : i32
    %c0_i32_0 = arith.constant 0 : i32
    %c0_i32_1 = arith.constant 0 : i32
    return %c0_i32, %c0_i32_0 : i32, i32
  }
  func.func @transform_6(%arg0: i32) -> (i32, i32, i32) {
    %c0_i32 = arith.constant 0 : i32
    %c0_i32_0 = arith.constant 0 : i32
    %c0_i32_1 = arith.constant 0 : i32
    return %arg0, %c0_i32, %c0_i32_0 : i32, i32, i32
  }
}

</mosaic_0001>

<llo_original>
// kernel: gcn_forward.1
$region0: #{gcn_forward.1}
  #allocation0 [shape = 'u32[]', space=smem, size = 0x4, offset = 0x4, fixed_abs, tag = 'smem constant byte address 0x4 - core index']
  #allocation1 [shape = 'u32[144,128]{1,0:T(1,128)}', space=vmem, size = 0x12000, scoped, tag = 'internal scratch']
  %s0 = inlined_call_operand.vmem [shape: f32[2,16,256], index: 0, kind: input, shape index: {}]
  %s1 = inlined_call_operand.vmem [shape: s32[2,256], index: 1, kind: input, shape index: {}]
  %s2 = inlined_call_operand.vmem [shape: f32[7,16,16], index: 2, kind: input, shape index: {}]
  %s3 = inlined_call_operand.vmem [shape: f32[16,1], index: 3, kind: input, shape index: {}]
  %s4 = inlined_call_operand.vmem [shape: f32[7,8,16], index: 4, kind: input, shape index: {}]
  %s5 = inlined_call_operand.vmem [shape: f32[8,1], index: 5, kind: input, shape index: {}]
  %s6 = inlined_call_operand.vmem [shape: f32[2,8,256], index: 6, kind: output, shape index: {}]
  %s7 = sld [smem:[#allocation0]]
  $region57: #{gcn_forward.1} parent=0
    _
  %s9 = ssub.s32 1, %s7
  %s10 = scalar_select 0, %s9, %s7
  loop: start=0, step=1, limit=4
  $region2: #{gcn_forward.1} parent=0 // loop_pre_header
    _
  $region3: #{gcn_forward.1} parent=0 // loop_header
    %s12 = sphi 0, %s16
    %p13 = scmp.ge.s32.totalorder %s12, 4
    %s22 = sphi 0, %s24
    %s25 = sphi 0, %s22
    %s26 = sphi 0, %s25
    %s42 = sphi 0, %s26
    %s46 = sphi 0, %s46
    %s48 = sphi 0, %s46
    %s49 = sphi 0, %s48
    %s63 = sphi 0, %s49
    %s67 = sphi 0, %s67
    %s69 = sphi 0, %s67
    %s70 = sphi 0, %s69
    %s84 = sphi 0, %s70
    %s88 = sphi 0, %s88
    %s90 = sphi 0, %s88
    %s91 = sphi 0, %s90
    %s105 = sphi 0, %s91
    %s109 = sphi 0, %s109
    %s111 = sphi 0, %s109
    %s112 = sphi 0, %s111
    %s126 = sphi 0, %s112
    %s130 = sphi 0, %s130
    %s132 = sphi 0, %s130
    %s133 = sphi 0, %s132
    %s147 = sphi 0, %s133
    %s153 = sphi 0, %s155
    %s156 = sphi 0, %s153
    %s157 = sphi 0, %s156
    %s173 = sphi 0, %s157
  $region4: #{gcn_forward.1} parent=0 // loop_header_branch
    %15 = sbr.rel (%p13) target = $region8
  $region5: #{gcn_forward.1} parent=0 // loop_body
    %s17 = ssub.s32 %s12, 1
    %s18 = ssub.s32 %s12, 2
    %s19 = sadd.s32 %s12, 1
    %s20 = ssub.s32 %s12, %s19
    %p21 = scmp.eq.s32.totalorder %s20, 0
    %s23 = sadd.s32 %s22, 1
    %s24 = scalar_select %p21, %s22, %s23
    %p27 = pneg %p21
    %p28 = scmp.eq.s32.totalorder %s12, 1
    %p29 = por %p27, %p28
    %p30 = scmp.ne.s32.totalorder %s22, %s25
    %p31 = scmp.eq.s32.totalorder %s12, 0
    %p32 = por %p30, %p31
    %p33 = scmp.ne.s32.totalorder %s22, %s25
    %p34 = scmp.eq.s32.totalorder %s17, 1
    %p35 = por %p33, %p34
    %p36 = scmp.ne.s32.totalorder %s25, %s26
    %p37 = scmp.eq.s32.totalorder %s17, 0
    %p38 = por %p36, %p37
    %p39 = scmp.ne.s32.totalorder %s25, %s26
    %p40 = scmp.eq.s32.totalorder %s18, 1
    %p41 = por %p39, %p40
    %p43 = scmp.ne.s32.totalorder %s26, %s42
    %p44 = scmp.eq.s32.totalorder %s18, 0
    %p45 = por %p43, %p44
    %s47 = sadd.s32 %s46, 1
    %p50 = scmp.eq.s32.totalorder %s12, 1
    %p51 = scmp.ne.s32.totalorder %s46, %s48
    %p52 = scmp.eq.s32.totalorder %s12, 0
    %p53 = por %p51, %p52
    %p54 = scmp.ne.s32.totalorder %s46, %s48
    %p55 = scmp.eq.s32.totalorder %s17, 1
    %p56 = por %p54, %p55
    %p57 = scmp.ne.s32.totalorder %s48, %s49
    %p58 = scmp.eq.s32.totalorder %s17, 0
    %p59 = por %p57, %p58
    %p60 = scmp.ne.s32.totalorder %s48, %s49
    %p61 = scmp.eq.s32.totalorder %s18, 1
    %p62 = por %p60, %p61
    %p64 = scmp.ne.s32.totalorder %s49, %s63
    %p65 = scmp.eq.s32.totalorder %s18, 0
    %p66 = por %p64, %p65
    %s68 = sadd.s32 %s67, 1
    %p71 = scmp.eq.s32.totalorder %s12, 1
    %p72 = scmp.ne.s32.totalorder %s67, %s69
    %p73 = scmp.eq.s32.totalorder %s12, 0
    %p74 = por %p72, %p73
    %p75 = scmp.ne.s32.totalorder %s67, %s69
    %p76 = scmp.eq.s32.totalorder %s17, 1
    %p77 = por %p75, %p76
    %p78 = scmp.ne.s32.totalorder %s69, %s70
    %p79 = scmp.eq.s32.totalorder %s17, 0
    %p80 = por %p78, %p79
    %p81 = scmp.ne.s32.totalorder %s69, %s70
    %p82 = scmp.eq.s32.totalorder %s18, 1
    %p83 = por %p81, %p82
    %p85 = scmp.ne.s32.totalorder %s70, %s84
    %p86 = scmp.eq.s32.totalorder %s18, 0
    %p87 = por %p85, %p86
    %s89 = sadd.s32 %s88, 1
    %p92 = scmp.eq.s32.totalorder %s12, 1
    %p93 = scmp.ne.s32.totalorder %s88, %s90
    %p94 = scmp.eq.s32.totalorder %s12, 0
    %p95 = por %p93, %p94
    %p96 = scmp.ne.s32.totalorder %s88, %s90
    %p97 = scmp.eq.s32.totalorder %s17, 1
    %p98 = por %p96, %p97
    %p99 = scmp.ne.s32.totalorder %s90, %s91
    %p100 = scmp.eq.s32.totalorder %s17, 0
    %p101 = por %p99, %p100
    %p102 = scmp.ne.s32.totalorder %s90, %s91
    %p103 = scmp.eq.s32.totalorder %s18, 1
    %p104 = por %p102, %p103
    %p106 = scmp.ne.s32.totalorder %s91, %s105
    %p107 = scmp.eq.s32.totalorder %s18, 0
    %p108 = por %p106, %p107
    %s110 = sadd.s32 %s109, 1
    %p113 = scmp.eq.s32.totalorder %s12, 1
    %p114 = scmp.ne.s32.totalorder %s109, %s111
    %p115 = scmp.eq.s32.totalorder %s12, 0
    %p116 = por %p114, %p115
    %p117 = scmp.ne.s32.totalorder %s109, %s111
    %p118 = scmp.eq.s32.totalorder %s17, 1
    %p119 = por %p117, %p118
    %p120 = scmp.ne.s32.totalorder %s111, %s112
    %p121 = scmp.eq.s32.totalorder %s17, 0
    %p122 = por %p120, %p121
    %p123 = scmp.ne.s32.totalorder %s111, %s112
    %p124 = scmp.eq.s32.totalorder %s18, 1
    %p125 = por %p123, %p124
    %p127 = scmp.ne.s32.totalorder %s112, %s126
    %p128 = scmp.eq.s32.totalorder %s18, 0
    %p129 = por %p127, %p128
    %s131 = sadd.s32 %s130, 1
    %p134 = scmp.eq.s32.totalorder %s12, 1
    %p135 = scmp.ne.s32.totalorder %s130, %s132
    %p136 = scmp.eq.s32.totalorder %s12, 0
    %p137 = por %p135, %p136
    %p138 = scmp.ne.s32.totalorder %s130, %s132
    %p139 = scmp.eq.s32.totalorder %s17, 1
    %p140 = por %p138, %p139
    %p141 = scmp.ne.s32.totalorder %s132, %s133
    %p142 = scmp.eq.s32.totalorder %s17, 0
    %p143 = por %p141, %p142
    %p144 = scmp.ne.s32.totalorder %s132, %s133
    %p145 = scmp.eq.s32.totalorder %s18, 1
    %p146 = por %p144, %p145
    %p148 = scmp.ne.s32.totalorder %s133, %s147
    %p149 = scmp.eq.s32.totalorder %s18, 0
    %p150 = por %p148, %p149
    %s151 = ssub.s32 %s12, %s19
    %p152 = scmp.eq.s32.totalorder %s151, 0
    %s154 = sadd.s32 %s153, 1
    %s155 = scalar_select %p152, %s153, %s154
    %p158 = pneg %p152
    %p159 = scmp.eq.s32.totalorder %s12, 1
    %p160 = por %p158, %p159
    %p161 = scmp.ne.s32.totalorder %s153, %s156
    %p162 = scmp.eq.s32.totalorder %s12, 0
    %p163 = por %p161, %p162
    %p164 = scmp.ne.s32.totalorder %s153, %s156
    %p165 = scmp.eq.s32.totalorder %s17, 1
    %p166 = por %p164, %p165
    %p167 = scmp.ne.s32.totalorder %s156, %s157
    %p168 = scmp.eq.s32.totalorder %s17, 0
    %p169 = por %p167, %p168
    %p170 = scmp.ne.s32.totalorder %s156, %s157
    %p171 = scmp.eq.s32.totalorder %s18, 1
    %p172 = por %p170, %p171
    %p174 = scmp.ne.s32.totalorder %s157, %s173
    %p175 = scmp.eq.s32.totalorder %s18, 0
    %p176 = por %p174, %p175
    %p177 = scmp.le.s32.totalorder 1, %s12
    %p178 = scmp.lt.s32.totalorder %s12, 3
    %p179 = pnand %p177, %p178
    %p180 = pneg %p179
    // Predicated region
    $region9: #{gcn_forward.1} parent=5 // pred_check
      _
    $region10: #{gcn_forward.1} parent=5 // pred_check_branch
      %182 = sbr.rel (%p179) target = $region12
    $region11: #{gcn_forward.1} parent=5 // pred_region
      %s183 = ssub.s32 %s12, 1
      // Predicated region
      $region13: #{gcn_forward.1} parent=11 // pred_check
        %p184 = pneg %p59
      $region14: #{gcn_forward.1} parent=11 // pred_check_branch
        %186 = sbr.rel (%p184) target = $region16
      $region15: #{gcn_forward.1} parent=11 // pred_region
        _
      $region16: #{gcn_forward.1} parent=11 // pred_fallthru
        _
      // Predicated region
      $region17: #{gcn_forward.1} parent=11 // pred_check
        %p187 = pneg %p80
      $region18: #{gcn_forward.1} parent=11 // pred_check_branch
        %189 = sbr.rel (%p187) target = $region20
      $region19: #{gcn_forward.1} parent=11 // pred_region
        _
      $region20: #{gcn_forward.1} parent=11 // pred_fallthru
        _
      // Predicated region
      $region21: #{gcn_forward.1} parent=11 // pred_check
        %p190 = pneg %p101
      $region22: #{gcn_forward.1} parent=11 // pred_check_branch
        %192 = sbr.rel (%p190) target = $region24
      $region23: #{gcn_forward.1} parent=11 // pred_region
        _
      $region24: #{gcn_forward.1} parent=11 // pred_fallthru
        _
      // Predicated region
      $region25: #{gcn_forward.1} parent=11 // pred_check
        %p193 = pneg %p122
      $region26: #{gcn_forward.1} parent=11 // pred_check_branch
        %195 = sbr.rel (%p193) target = $region28
      $region27: #{gcn_forward.1} parent=11 // pred_region
        _
      $region28: #{gcn_forward.1} parent=11 // pred_fallthru
        _
      // Predicated region
      $region29: #{gcn_forward.1} parent=11 // pred_check
        %p196 = pneg %p143
      $region30: #{gcn_forward.1} parent=11 // pred_check_branch
        %198 = sbr.rel (%p196) target = $region32
      $region31: #{gcn_forward.1} parent=11 // pred_region
        _
      $region32: #{gcn_forward.1} parent=11 // pred_fallthru
        _
    $region12: #{gcn_forward.1} parent=5 // pred_fallthru
      _
    %p199 = scmp.lt.s32.totalorder %s12, 2
    // Predicated region
    $region33: #{gcn_forward.1} parent=5 // pred_check
      %p200 = pneg %p199
    $region34: #{gcn_forward.1} parent=5 // pred_check_branch
      %202 = sbr.rel (%p200) target = $region36
    $region35: #{gcn_forward.1} parent=5 // pred_region
      // Predicated region
      $region37: #{gcn_forward.1} parent=35 // pred_check
        %p203 = pneg %p32
      $region38: #{gcn_forward.1} parent=35 // pred_check_branch
        %205 = sbr.rel (%p203) target = $region40
      $region39: #{gcn_forward.1} parent=35 // pred_region
        %p206 = scmp.lt.s32.totalorder %s12, 1
        %s207 = scalar_select %p206, %s12, 1
        %s208 = smul.addr %s207, 4
        %s209 = smul.addr %s208, 8
        %s210 = scalar_lea.vmem %s0, %s209
      $region40: #{gcn_forward.1} parent=35 // pred_fallthru
        _
    $region36: #{gcn_forward.1} parent=5 // pred_fallthru
      _
    %p211 = scmp.le.s32.totalorder 1, %s12
    %p212 = scmp.lt.s32.totalorder %s12, 3
    %p213 = pnand %p211, %p212
    %p214 = pneg %p213
    // Predicated region
    $region41: #{gcn_forward.1} parent=5 // pred_check
      _
    $region42: #{gcn_forward.1} parent=5 // pred_check_branch
      %216 = sbr.rel (%p213) target = $region44
    $region43: #{gcn_forward.1} parent=5 // pred_region
      %s217 = ssub.s32 %s12, 1
      %p218 = scmp.lt.s32.totalorder %s17, 1
      %s219 = scalar_select %p218, %s17, 1
      %s220 = smul.addr %s219, 4
      %s221 = smul.addr %s220, 8
      %s222 = scalar_lea.vmem %s0, %s221
      %p223 = pneg %p38
      %p224 = pneg %p35
      %p225 = pneg %p59
      %p226 = pneg %p56
      %p227 = pneg %p80
      %p228 = pneg %p77
      %p229 = pneg %p101
      %p230 = pneg %p98
      %p231 = pneg %p122
      %p232 = pneg %p119
      %p233 = pneg %p143
      %p234 = pneg %p140
      %p235 = pneg %p169
      %p236 = pneg %p166
      %p237 = scmp.lt.s32.totalorder %s17, 1
      %s238 = scalar_select %p237, %s17, 1
      %s239 = smul.addr %s238, 2
      %s240 = smul.addr %s239, 8
      %s241 = scalar_lea.vmem %s6, %s240
      %p242 = scmp.lt.s32.totalorder %s17, 1
      %s243 = scalar_select %p242, %s17, 1
      %s244 = smul.addr %s243, 4
      %s245 = smul.addr %s244, 8
      %s246 = scalar_lea.vmem %s0, %s245
      %p247 = scmp.lt.s32.totalorder %s17, 1
      %s248 = scalar_select %p247, %s17, 1
      %s249 = smul.addr %s248, 2
      %s250 = smul.addr %s249, 8
      %s251 = scalar_lea.vmem %s6, %s250
      %v252 = vld [vmem:[%s246] sm:$0xff]
      %v253 = vld [vmem:[%s246 + $0x8] sm:$0xff]
      %v254 = vld [vmem:[%s246 + $0x10] sm:$0xff]
      %v255 = vld [vmem:[%s246 + $0x18] sm:$0xff]
      %v256 = vld [vmem:[%s1] sm:$0xf]
      %s257 = scalar_lea.vmem %s2, 48
      %v258 = vld [vmem:[%s257] sm:$0xff]
      %v259 = vld [vmem:[%s257 + $0x8] sm:$0xff]
      %260 = vrot.lane.b32.xlu0 %v252, 48
      %v261 = vpop.permute.xlu0 %260
      %262 = vrot.lane.b32.xlu0 %v254, 48
      %v263 = vpop.permute.xlu0 %262
      %264 = vrot.lane.b32.xlu0 %v253, 48
      %v265 = vpop.permute.xlu0 %264
      %266 = vrot.lane.b32.xlu0 %v255, 48
      %v267 = vpop.permute.xlu0 %266
      %v268 = vlaneseq
      %v269 = vand.u32 %v268, 127
      %vm270 = vcmp.lt.s32.totalorder %v269, 48
      %v271 = vsel %vm270, %v261, %v265
      %v272 = vsel %vm270, %v263, %v267
      %v273 = vsel %vm270, %v265, %v261
      %v274 = vsel %vm270, %v267, %v263
      %vm275 = vcmp.ge.s32.totalorder %v256, 3
      %vm276 = vcmp.lt.s32.totalorder %v256, 19
      %vm277 = vmand %vm275, %vm276
      %v278 = vsel %vm277, 1, 0
      %v279 = vlaneseq
      %v280 = vshrl.u32 %v279, 7
      %v281 = vsub.s32 0, %v280
      %v282 = vrot.slane %v278, %v281
      %v283 = vlaneseq
      %v284 = vshrl.u32 %v283, 7
      %v285 = vsub.s32 2, %v284
      %v286 = vrot.slane %v278, %v285
      %v287 = vlaneseq
      %v288 = vshrl.u32 %v287, 7
      %v289 = vsub.s32 0, %v288
      %v290 = vrot.slane %v282, %v289
      %v291 = vlaneseq
      %v292 = vshrl.u32 %v291, 7
      %v293 = vsub.s32 0, %v292
      %v294 = vrot.slane %v286, %v293
      %vm295 = vcmp.eq.s32.totalorder %v290, 1
      %vm296 = vcmp.eq.s32.totalorder %v294, 1
      %v297 = vsel %vm295, %v273, 0.0
      %v298 = vsel %vm296, %v271, 0.0
      %v299 = vsel %vm295, %v274, 0.0
      %v300 = vsel %vm296, %v272, 0.0
      %v301 = vld [vmem:[%s2] sm:$0xff]
      %v302 = vld [vmem:[%s2 + $0x8] sm:$0xff]
      %vm303 = vcmask 130048
      %v305 = vsel %vm303, %v301, 0
      %v308 = vsel %vm303, %v302, 0
      %310 = vmatprep.subr.mxu0 0.0
      %311 = vmatpush1.msra.mxu0 0.0
      %312 = vmatprep.subr.mxu0 0.0
      %313 = vmatpush1.msra.mxu0 0.0
      %314 = vmatprep.subr.mxu0 0.0
      %315 = vmatpush1.msra.mxu0 0.0
      %316 = vmatprep.subr.mxu0 0.0
      %317 = vmatpush1.msra.mxu0 0.0
      %318 = vmatprep.subr.mxu0 0.0
      %319 = vmatpush1.msra.mxu0 0.0
      %320 = vmatprep.subr.mxu0 0.0
      %321 = vmatpush1.msra.mxu0 0.0
      %322 = vmatprep.subr.mxu0 0.0
      %323 = vmatpush1.msra.mxu0 0.0
      %324 = vmatprep.subr.mxu0 0.0
      %325 = vmatpush1.msra.mxu0 0.0
      %326 = vmatprep.subr.mxu0 0.0
      %327 = vmatpush1.msra.mxu0 0.0
      %328 = vmatprep.subr.mxu0 0.0
      %329 = vmatpush1.msra.mxu0 0.0
      %330 = vmatprep.subr.mxu0 0.0
      %331 = vmatpush1.msra.mxu0 0.0
      %332 = vmatprep.subr.mxu0 0.0
      %333 = vmatpush1.msra.mxu0 0.0
      %334 = vmatprep.subr.mxu0 0.0
      %335 = vmatpush1.msra.mxu0 0.0
      %336 = vmatprep.subr.mxu0 0.0
      %337 = vmatpush1.msra.mxu0 0.0
      %338 = vmatprep.subr.mxu0 %v300
      %339 = vmatpush1.msra.mxu0 %v299
      %340 = vmatprep.subr.mxu0 %v298
      %341 = vmatpush1.msra.mxu0 %v297
      %342 = vmatprep.subr.mxu0 0.0
      %343 = vmatpush2.msra.mxu0 0.0
      %344 = vmatprep.subr.mxu0 0.0
      %345 = vmatpush2.msra.mxu0 0.0
      %346 = vmatprep.subr.mxu0 0.0
      %347 = vmatpush2.msra.mxu0 0.0
      %348 = vmatprep.subr.mxu0 0.0
      %349 = vmatpush2.msra.mxu0 0.0
      %350 = vmatprep.subr.mxu0 0.0
      %351 = vmatpush2.msra.mxu0 0.0
      %352 = vmatprep.subr.mxu0 0.0
      %353 = vmatpush2.msra.mxu0 0.0
      %354 = vmatprep.subr.mxu0 0.0
      %355 = vmatpush2.msra.mxu0 0.0
      %356 = vmatprep.subr.mxu0 0.0
      %357 = vmatpush2.msra.mxu0 0.0
      %358 = vmatprep.subr.mxu0 0.0
      %359 = vmatpush2.msra.mxu0 0.0
      %360 = vmatprep.subr.mxu0 0.0
      %361 = vmatpush2.msra.mxu0 0.0
      %362 = vmatprep.subr.mxu0 0.0
      %363 = vmatpush2.msra.mxu0 0.0
      %364 = vmatprep.subr.mxu0 0.0
      %365 = vmatpush2.msra.mxu0 0.0
      %366 = vmatprep.subr.mxu0 0.0
      %367 = vmatpush2.msra.mxu0 0.0
      %368 = vmatprep.subr.mxu0 0.0
      %369 = vmatpush2.msra.mxu0 0.0
      %370 = vmatprep.subr.mxu0 0.0
      %371 = vmatpush2.msra.mxu0 0.0
      %372 = vmatprep.subr.mxu0 0.0
      %373 = vmatpush2.msra.mxu0 0.0
      %374 = vmatprep.mubr.f32.mxu0 0.0
      %375 = vmatmul.mubr.f32.gmra.mxu0 %v305
      %v376 = vpop.f32.mrf.mxu0
      %v377 = vadd.f32 0.0, %v376
      %v378 = vpop.f32.mrf.mxu0
      %v379 = vadd.f32 0.0, %v378
      %380 = vmatprep.mubr.f32.mxu0 0.0
      %381 = vmatmul.mubr.f32.gmra.mxu0 %v308
      %v382 = vpop.f32.mrf.mxu0
      %v383 = vadd.f32 0.0, %v382
      %v384 = vpop.f32.mrf.mxu0
      %v385 = vadd.f32 0.0, %v384
      %386 = vdwg.mxu0
      %v388 = vsel %vm303, %v258, 0
      %v391 = vsel %vm303, %v259, 0
      %393 = vmatprep.subr.mxu0 0.0
      %394 = vmatpush1.msra.mxu0 0.0
      %395 = vmatprep.subr.mxu0 0.0
      %396 = vmatpush1.msra.mxu0 0.0
      %397 = vmatprep.subr.mxu0 0.0
      %398 = vmatpush1.msra.mxu0 0.0
      %399 = vmatprep.subr.mxu0 0.0
      %400 = vmatpush1.msra.mxu0 0.0
      %401 = vmatprep.subr.mxu0 0.0
      %402 = vmatpush1.msra.mxu0 0.0
      %403 = vmatprep.subr.mxu0 0.0
      %404 = vmatpush1.msra.mxu0 0.0
      %405 = vmatprep.subr.mxu0 0.0
      %406 = vmatpush1.msra.mxu0 0.0
      %407 = vmatprep.subr.mxu0 0.0
      %408 = vmatpush1.msra.mxu0 0.0
      %409 = vmatprep.subr.mxu0 0.0
      %410 = vmatpush1.msra.mxu0 0.0
      %411 = vmatprep.subr.mxu0 0.0
      %412 = vmatpush1.msra.mxu0 0.0
      %413 = vmatprep.subr.mxu0 0.0
      %414 = vmatpush1.msra.mxu0 0.0
      %415 = vmatprep.subr.mxu0 0.0
      %416 = vmatpush1.msra.mxu0 0.0
      %417 = vmatprep.subr.mxu0 0.0
      %418 = vmatpush1.msra.mxu0 0.0
      %419 = vmatprep.subr.mxu0 0.0
      %420 = vmatpush1.msra.mxu0 0.0
      %421 = vmatprep.subr.mxu0 %v255
      %422 = vmatpush1.msra.mxu0 %v254
      %423 = vmatprep.subr.mxu0 %v253
      %424 = vmatpush1.msra.mxu0 %v252
      %425 = vmatprep.subr.mxu0 0.0
      %426 = vmatpush2.msra.mxu0 0.0
      %427 = vmatprep.subr.mxu0 0.0
      %428 = vmatpush2.msra.mxu0 0.0
      %429 = vmatprep.subr.mxu0 0.0
      %430 = vmatpush2.msra.mxu0 0.0
      %431 = vmatprep.subr.mxu0 0.0
      %432 = vmatpush2.msra.mxu0 0.0
      %433 = vmatprep.subr.mxu0 0.0
      %434 = vmatpush2.msra.mxu0 0.0
      %435 = vmatprep.subr.mxu0 0.0
      %436 = vmatpush2.msra.mxu0 0.0
      %437 = vmatprep.subr.mxu0 0.0
      %438 = vmatpush2.msra.mxu0 0.0
      %439 = vmatprep.subr.mxu0 0.0
      %440 = vmatpush2.msra.mxu0 0.0
      %441 = vmatprep.subr.mxu0 0.0
      %442 = vmatpush2.msra.mxu0 0.0
      %443 = vmatprep.subr.mxu0 0.0
      %444 = vmatpush2.msra.mxu0 0.0
      %445 = vmatprep.subr.mxu0 0.0
      %446 = vmatpush2.msra.mxu0 0.0
      %447 = vmatprep.subr.mxu0 0.0
      %448 = vmatpush2.msra.mxu0 0.0
      %449 = vmatprep.subr.mxu0 0.0
      %450 = vmatpush2.msra.mxu0 0.0
      %451 = vmatprep.subr.mxu0 0.0
      %452 = vmatpush2.msra.mxu0 0.0
      %453 = vmatprep.subr.mxu0 0.0
      %454 = vmatpush2.msra.mxu0 0.0
      %455 = vmatprep.subr.mxu0 0.0
      %456 = vmatpush2.msra.mxu0 0.0
      %457 = vmatprep.mubr.f32.mxu0 0.0
      %458 = vmatmul.mubr.f32.gmra.mxu0 %v388
      %v459 = vpop.f32.mrf.mxu0
      %v460 = vadd.f32 %v377, %v459
      %v461 = vpop.f32.mrf.mxu0
      %v462 = vadd.f32 %v379, %v461
      %463 = vmatprep.mubr.f32.mxu0 0.0
      %464 = vmatmul.mubr.f32.gmra.mxu0 %v391
      %v465 = vpop.f32.mrf.mxu0
      %v466 = vadd.f32 %v383, %v465
      %v467 = vpop.f32.mrf.mxu0
      %v468 = vadd.f32 %v385, %v467
      %469 = vdwg.mxu0
      %470 = vrot.lane.b32.xlu0 %v252, 32
      %v471 = vpop.permute.xlu0 %470
      %472 = vrot.lane.b32.xlu0 %v254, 32
      %v473 = vpop.permute.xlu0 %472
      %474 = vrot.lane.b32.xlu0 %v253, 32
      %v475 = vpop.permute.xlu0 %474
      %476 = vrot.lane.b32.xlu0 %v255, 32
      %v477 = vpop.permute.xlu0 %476
      %vm478 = vcmp.lt.s32.totalorder %v269, 32
      %v479 = vsel %vm478, %v471, %v475
      %v480 = vsel %vm478, %v473, %v477
      %v481 = vsel %vm478, %v475, %v471
      %v482 = vsel %vm478, %v477, %v473
      %vm483 = vcmp.ge.s32.totalorder %v256, 2
      %vm484 = vcmp.lt.s32.totalorder %v256, 18
      %vm485 = vmand %vm483, %vm484
      %v486 = vsel %vm485, 1, 0
      %v487 = vlaneseq
      %v488 = vshrl.u32 %v487, 7
      %v489 = vsub.s32 0, %v488
      %v490 = vrot.slane %v486, %v489
      %v491 = vlaneseq
      %v492 = vshrl.u32 %v491, 7
      %v493 = vsub.s32 2, %v492
      %v494 = vrot.slane %v486, %v493
      %v495 = vlaneseq
      %v496 = vshrl.u32 %v495, 7
      %v497 = vsub.s32 0, %v496
      %v498 = vrot.slane %v490, %v497
      %v499 = vlaneseq
      %v500 = vshrl.u32 %v499, 7
      %v501 = vsub.s32 0, %v500
      %v502 = vrot.slane %v494, %v501
      %vm503 = vcmp.eq.s32.totalorder %v498, 1
      %vm504 = vcmp.eq.s32.totalorder %v502, 1
      %v505 = vsel %vm503, %v481, 0.0
      %v506 = vsel %vm504, %v479, 0.0
      %v507 = vsel %vm503, %v482, 0.0
      %v508 = vsel %vm504, %v480, 0.0
      %s509 = scalar_lea.vmem %s2, 16
      %v510 = vld [vmem:[%s509] sm:$0xff]
      %v511 = vld [vmem:[%s509 + $0x8] sm:$0xff]
      %v513 = vsel %vm303, %v510, 0
      %v516 = vsel %vm303, %v511, 0
      %518 = vmatprep.subr.mxu0 0.0
      %519 = vmatpush1.msra.mxu0 0.0
      %520 = vmatprep.subr.mxu0 0.0
      %521 = vmatpush1.msra.mxu0 0.0
      %522 = vmatprep.subr.mxu0 0.0
      %523 = vmatpush1.msra.mxu0 0.0
      %524 = vmatprep.subr.mxu0 0.0
      %525 = vmatpush1.msra.mxu0 0.0
      %526 = vmatprep.subr.mxu0 0.0
      %527 = vmatpush1.msra.mxu0 0.0
      %528 = vmatprep.subr.mxu0 0.0
      %529 = vmatpush1.msra.mxu0 0.0
      %530 = vmatprep.subr.mxu0 0.0
      %531 = vmatpush1.msra.mxu0 0.0
      %532 = vmatprep.subr.mxu0 0.0
      %533 = vmatpush1.msra.mxu0 0.0
      %534 = vmatprep.subr.mxu0 0.0
      %535 = vmatpush1.msra.mxu0 0.0
      %536 = vmatprep.subr.mxu0 0.0
      %537 = vmatpush1.msra.mxu0 0.0
      %538 = vmatprep.subr.mxu0 0.0
      %539 = vmatpush1.msra.mxu0 0.0
      %540 = vmatprep.subr.mxu0 0.0
      %541 = vmatpush1.msra.mxu0 0.0
      %542 = vmatprep.subr.mxu0 0.0
      %543 = vmatpush1.msra.mxu0 0.0
      %544 = vmatprep.subr.mxu0 0.0
      %545 = vmatpush1.msra.mxu0 0.0
      %546 = vmatprep.subr.mxu0 %v508
      %547 = vmatpush1.msra.mxu0 %v507
      %548 = vmatprep.subr.mxu0 %v506
      %549 = vmatpush1.msra.mxu0 %v505
      %550 = vmatprep.subr.mxu0 0.0
      %551 = vmatpush2.msra.mxu0 0.0
      %552 = vmatprep.subr.mxu0 0.0
      %553 = vmatpush2.msra.mxu0 0.0
      %554 = vmatprep.subr.mxu0 0.0
      %555 = vmatpush2.msra.mxu0 0.0
      %556 = vmatprep.subr.mxu0 0.0
      %557 = vmatpush2.msra.mxu0 0.0
      %558 = vmatprep.subr.mxu0 0.0
      %559 = vmatpush2.msra.mxu0 0.0
      %560 = vmatprep.subr.mxu0 0.0
      %561 = vmatpush2.msra.mxu0 0.0
      %562 = vmatprep.subr.mxu0 0.0
      %563 = vmatpush2.msra.mxu0 0.0
      %564 = vmatprep.subr.mxu0 0.0
      %565 = vmatpush2.msra.mxu0 0.0
      %566 = vmatprep.subr.mxu0 0.0
      %567 = vmatpush2.msra.mxu0 0.0
      %568 = vmatprep.subr.mxu0 0.0
      %569 = vmatpush2.msra.mxu0 0.0
      %570 = vmatprep.subr.mxu0 0.0
      %571 = vmatpush2.msra.mxu0 0.0
      %572 = vmatprep.subr.mxu0 0.0
      %573 = vmatpush2.msra.mxu0 0.0
      %574 = vmatprep.subr.mxu0 0.0
      %575 = vmatpush2.msra.mxu0 0.0
      %576 = vmatprep.subr.mxu0 0.0
      %577 = vmatpush2.msra.mxu0 0.0
      %578 = vmatprep.subr.mxu0 0.0
      %579 = vmatpush2.msra.mxu0 0.0
      %580 = vmatprep.subr.mxu0 0.0
      %581 = vmatpush2.msra.mxu0 0.0
      %582 = vmatprep.mubr.f32.mxu0 0.0
      %583 = vmatmul.mubr.f32.gmra.mxu0 %v513
      %v584 = vpop.f32.mrf.mxu0
      %v585 = vadd.f32 0.0, %v584
      %v586 = vpop.f32.mrf.mxu0
      %v587 = vadd.f32 0.0, %v586
      %588 = vmatprep.mubr.f32.mxu0 0.0
      %589 = vmatmul.mubr.f32.gmra.mxu0 %v516
      %v590 = vpop.f32.mrf.mxu0
      %v591 = vadd.f32 0.0, %v590
      %v592 = vpop.f32.mrf.mxu0
      %v593 = vadd.f32 0.0, %v592
      %594 = vdwg.mxu0
      %v595 = vadd.f32 %v460, %v585
      %v596 = vadd.f32 %v462, %v587
      %v597 = vadd.f32 %v466, %v591
      %v598 = vadd.f32 %v468, %v593
      %599 = vrot.lane.b32.xlu0 %v252, 16
      %v600 = vpop.permute.xlu0 %599
      %601 = vrot.lane.b32.xlu0 %v254, 16
      %v602 = vpop.permute.xlu0 %601
      %603 = vrot.lane.b32.xlu0 %v253, 16
      %v604 = vpop.permute.xlu0 %603
      %605 = vrot.lane.b32.xlu0 %v255, 16
      %v606 = vpop.permute.xlu0 %605
      %vm607 = vcmp.lt.s32.totalorder %v269, 16
      %v608 = vsel %vm607, %v600, %v604
      %v609 = vsel %vm607, %v602, %v606
      %v610 = vsel %vm607, %v604, %v600
      %v611 = vsel %vm607, %v606, %v602
      %vm612 = vcmp.ge.s32.totalorder %v256, 1
      %vm613 = vcmp.lt.s32.totalorder %v256, 17
      %vm614 = vmand %vm612, %vm613
      %v615 = vsel %vm614, 1, 0
      %v616 = vlaneseq
      %v617 = vshrl.u32 %v616, 7
      %v618 = vsub.s32 0, %v617
      %v619 = vrot.slane %v615, %v618
      %v620 = vlaneseq
      %v621 = vshrl.u32 %v620, 7
      %v622 = vsub.s32 2, %v621
      %v623 = vrot.slane %v615, %v622
      %v624 = vlaneseq
      %v625 = vshrl.u32 %v624, 7
      %v626 = vsub.s32 0, %v625
      %v627 = vrot.slane %v619, %v626
      %v628 = vlaneseq
      %v629 = vshrl.u32 %v628, 7
      %v630 = vsub.s32 0, %v629
      %v631 = vrot.slane %v623, %v630
      %vm632 = vcmp.eq.s32.totalorder %v627, 1
      %vm633 = vcmp.eq.s32.totalorder %v631, 1
      %v634 = vsel %vm632, %v610, 0.0
      %v635 = vsel %vm633, %v608, 0.0
      %v636 = vsel %vm632, %v611, 0.0
      %v637 = vsel %vm633, %v609, 0.0
      %s638 = scalar_lea.vmem %s2, 32
      %v639 = vld [vmem:[%s638] sm:$0xff]
      %v640 = vld [vmem:[%s638 + $0x8] sm:$0xff]
      %v642 = vsel %vm303, %v639, 0
      %v645 = vsel %vm303, %v640, 0
      %647 = vmatprep.subr.mxu0 0.0
      %648 = vmatpush1.msra.mxu0 0.0
      %649 = vmatprep.subr.mxu0 0.0
      %650 = vmatpush1.msra.mxu0 0.0
      %651 = vmatprep.subr.mxu0 0.0
      %652 = vmatpush1.msra.mxu0 0.0
      %653 = vmatprep.subr.mxu0 0.0
      %654 = vmatpush1.msra.mxu0 0.0
      %655 = vmatprep.subr.mxu0 0.0
      %656 = vmatpush1.msra.mxu0 0.0
      %657 = vmatprep.subr.mxu0 0.0
      %658 = vmatpush1.msra.mxu0 0.0
      %659 = vmatprep.subr.mxu0 0.0
      %660 = vmatpush1.msra.mxu0 0.0
      %661 = vmatprep.subr.mxu0 0.0
      %662 = vmatpush1.msra.mxu0 0.0
      %663 = vmatprep.subr.mxu0 0.0
      %664 = vmatpush1.msra.mxu0 0.0
      %665 = vmatprep.subr.mxu0 0.0
      %666 = vmatpush1.msra.mxu0 0.0
      %667 = vmatprep.subr.mxu0 0.0
      %668 = vmatpush1.msra.mxu0 0.0
      %669 = vmatprep.subr.mxu0 0.0
      %670 = vmatpush1.msra.mxu0 0.0
      %671 = vmatprep.subr.mxu0 0.0
      %672 = vmatpush1.msra.mxu0 0.0
      %673 = vmatprep.subr.mxu0 0.0
      %674 = vmatpush1.msra.mxu0 0.0
      %675 = vmatprep.subr.mxu0 %v637
      %676 = vmatpush1.msra.mxu0 %v636
      %677 = vmatprep.subr.mxu0 %v635
      %678 = vmatpush1.msra.mxu0 %v634
      %679 = vmatprep.subr.mxu0 0.0
      %680 = vmatpush2.msra.mxu0 0.0
      %681 = vmatprep.subr.mxu0 0.0
      %682 = vmatpush2.msra.mxu0 0.0
      %683 = vmatprep.subr.mxu0 0.0
      %684 = vmatpush2.msra.mxu0 0.0
      %685 = vmatprep.subr.mxu0 0.0
      %686 = vmatpush2.msra.mxu0 0.0
      %687 = vmatprep.subr.mxu0 0.0
      %688 = vmatpush2.msra.mxu0 0.0
      %689 = vmatprep.subr.mxu0 0.0
      %690 = vmatpush2.msra.mxu0 0.0
      %691 = vmatprep.subr.mxu0 0.0
      %692 = vmatpush2.msra.mxu0 0.0
      %693 = vmatprep.subr.mxu0 0.0
      %694 = vmatpush2.msra.mxu0 0.0
      %695 = vmatprep.subr.mxu0 0.0
      %696 = vmatpush2.msra.mxu0 0.0
      %697 = vmatprep.subr.mxu0 0.0
      %698 = vmatpush2.msra.mxu0 0.0
      %699 = vmatprep.subr.mxu0 0.0
      %700 = vmatpush2.msra.mxu0 0.0
      %701 = vmatprep.subr.mxu0 0.0
      %702 = vmatpush2.msra.mxu0 0.0
      %703 = vmatprep.subr.mxu0 0.0
      %704 = vmatpush2.msra.mxu0 0.0
      %705 = vmatprep.subr.mxu0 0.0
      %706 = vmatpush2.msra.mxu0 0.0
      %707 = vmatprep.subr.mxu0 0.0
      %708 = vmatpush2.msra.mxu0 0.0
      %709 = vmatprep.subr.mxu0 0.0
      %710 = vmatpush2.msra.mxu0 0.0
      %711 = vmatprep.mubr.f32.mxu0 0.0
      %712 = vmatmul.mubr.f32.gmra.mxu0 %v642
      %v713 = vpop.f32.mrf.mxu0
      %v714 = vadd.f32 0.0, %v713
      %v715 = vpop.f32.mrf.mxu0
      %v716 = vadd.f32 0.0, %v715
      %717 = vmatprep.mubr.f32.mxu0 0.0
      %718 = vmatmul.mubr.f32.gmra.mxu0 %v645
      %v719 = vpop.f32.mrf.mxu0
      %v720 = vadd.f32 0.0, %v719
      %v721 = vpop.f32.mrf.mxu0
      %v722 = vadd.f32 0.0, %v721
      %723 = vdwg.mxu0
      %v724 = vadd.f32 %v595, %v714
      %v725 = vadd.f32 %v596, %v716
      %v726 = vadd.f32 %v597, %v720
      %v727 = vadd.f32 %v598, %v722
      %728 = vrot.lane.b32.xlu0 %v252, 112
      %v729 = vpop.permute.xlu0 %728
      %730 = vrot.lane.b32.xlu0 %v254, 112
      %v731 = vpop.permute.xlu0 %730
      %732 = vrot.lane.b32.xlu0 %v253, 112
      %v733 = vpop.permute.xlu0 %732
      %734 = vrot.lane.b32.xlu0 %v255, 112
      %v735 = vpop.permute.xlu0 %734
      %vm736 = vcmp.lt.s32.totalorder %v269, 112
      %v737 = vsel %vm736, %v729, %v733
      %v738 = vsel %vm736, %v731, %v735
      %v739 = vsel %vm736, %v733, %v729
      %v740 = vsel %vm736, %v735, %v731
      %vm741 = vcmp.ge.s32.totalorder %v256, 4294967295
      %vm742 = vcmp.lt.s32.totalorder %v256, 15
      %vm743 = vmand %vm741, %vm742
      %v744 = vsel %vm743, 1, 0
      %v745 = vlaneseq
      %v746 = vshrl.u32 %v745, 7
      %v747 = vsub.s32 0, %v746
      %v748 = vrot.slane %v744, %v747
      %v749 = vlaneseq
      %v750 = vshrl.u32 %v749, 7
      %v751 = vsub.s32 2, %v750
      %v752 = vrot.slane %v744, %v751
      %v753 = vlaneseq
      %v754 = vshrl.u32 %v753, 7
      %v755 = vsub.s32 0, %v754
      %v756 = vrot.slane %v748, %v755
      %v757 = vlaneseq
      %v758 = vshrl.u32 %v757, 7
      %v759 = vsub.s32 0, %v758
      %v760 = vrot.slane %v752, %v759
      %vm761 = vcmp.eq.s32.totalorder %v756, 1
      %vm762 = vcmp.eq.s32.totalorder %v760, 1
      %v763 = vsel %vm761, %v737, 0.0
      %v764 = vsel %vm762, %v739, 0.0
      %v765 = vsel %vm761, %v738, 0.0
      %v766 = vsel %vm762, %v740, 0.0
      %s767 = scalar_lea.vmem %s2, 64
      %v768 = vld [vmem:[%s767] sm:$0xff]
      %v769 = vld [vmem:[%s767 + $0x8] sm:$0xff]
      %v771 = vsel %vm303, %v768, 0
      %v774 = vsel %vm303, %v769, 0
      %776 = vmatprep.subr.mxu0 0.0
      %777 = vmatpush1.msra.mxu0 0.0
      %778 = vmatprep.subr.mxu0 0.0
      %779 = vmatpush1.msra.mxu0 0.0
      %780 = vmatprep.subr.mxu0 0.0
      %781 = vmatpush1.msra.mxu0 0.0
      %782 = vmatprep.subr.mxu0 0.0
      %783 = vmatpush1.msra.mxu0 0.0
      %784 = vmatprep.subr.mxu0 0.0
      %785 = vmatpush1.msra.mxu0 0.0
      %786 = vmatprep.subr.mxu0 0.0
      %787 = vmatpush1.msra.mxu0 0.0
      %788 = vmatprep.subr.mxu0 0.0
      %789 = vmatpush1.msra.mxu0 0.0
      %790 = vmatprep.subr.mxu0 0.0
      %791 = vmatpush1.msra.mxu0 0.0
      %792 = vmatprep.subr.mxu0 0.0
      %793 = vmatpush1.msra.mxu0 0.0
      %794 = vmatprep.subr.mxu0 0.0
      %795 = vmatpush1.msra.mxu0 0.0
      %796 = vmatprep.subr.mxu0 0.0
      %797 = vmatpush1.msra.mxu0 0.0
      %798 = vmatprep.subr.mxu0 0.0
      %799 = vmatpush1.msra.mxu0 0.0
      %800 = vmatprep.subr.mxu0 0.0
      %801 = vmatpush1.msra.mxu0 0.0
      %802 = vmatprep.subr.mxu0 0.0
      %803 = vmatpush1.msra.mxu0 0.0
      %804 = vmatprep.subr.mxu0 %v766
      %805 = vmatpush1.msra.mxu0 %v765
      %806 = vmatprep.subr.mxu0 %v764
      %807 = vmatpush1.msra.mxu0 %v763
      %808 = vmatprep.subr.mxu0 0.0
      %809 = vmatpush2.msra.mxu0 0.0
      %810 = vmatprep.subr.mxu0 0.0
      %811 = vmatpush2.msra.mxu0 0.0
      %812 = vmatprep.subr.mxu0 0.0
      %813 = vmatpush2.msra.mxu0 0.0
      %814 = vmatprep.subr.mxu0 0.0
      %815 = vmatpush2.msra.mxu0 0.0
      %816 = vmatprep.subr.mxu0 0.0
      %817 = vmatpush2.msra.mxu0 0.0
      %818 = vmatprep.subr.mxu0 0.0
      %819 = vmatpush2.msra.mxu0 0.0
      %820 = vmatprep.subr.mxu0 0.0
      %821 = vmatpush2.msra.mxu0 0.0
      %822 = vmatprep.subr.mxu0 0.0
      %823 = vmatpush2.msra.mxu0 0.0
      %824 = vmatprep.subr.mxu0 0.0
      %825 = vmatpush2.msra.mxu0 0.0
      %826 = vmatprep.subr.mxu0 0.0
      %827 = vmatpush2.msra.mxu0 0.0
      %828 = vmatprep.subr.mxu0 0.0
      %829 = vmatpush2.msra.mxu0 0.0
      %830 = vmatprep.subr.mxu0 0.0
      %831 = vmatpush2.msra.mxu0 0.0
      %832 = vmatprep.subr.mxu0 0.0
      %833 = vmatpush2.msra.mxu0 0.0
      %834 = vmatprep.subr.mxu0 0.0
      %835 = vmatpush2.msra.mxu0 0.0
      %836 = vmatprep.subr.mxu0 0.0
      %837 = vmatpush2.msra.mxu0 0.0
      %838 = vmatprep.subr.mxu0 0.0
      %839 = vmatpush2.msra.mxu0 0.0
      %840 = vmatprep.mubr.f32.mxu0 0.0
      %841 = vmatmul.mubr.f32.gmra.mxu0 %v771
      %v842 = vpop.f32.mrf.mxu0
      %v843 = vadd.f32 0.0, %v842
      %v844 = vpop.f32.mrf.mxu0
      %v845 = vadd.f32 0.0, %v844
      %846 = vmatprep.mubr.f32.mxu0 0.0
      %847 = vmatmul.mubr.f32.gmra.mxu0 %v774
      %v848 = vpop.f32.mrf.mxu0
      %v849 = vadd.f32 0.0, %v848
      %v850 = vpop.f32.mrf.mxu0
      %v851 = vadd.f32 0.0, %v850
      %852 = vdwg.mxu0
      %v853 = vadd.f32 %v724, %v843
      %v854 = vadd.f32 %v725, %v845
      %v855 = vadd.f32 %v726, %v849
      %v856 = vadd.f32 %v727, %v851
      %857 = vrot.lane.b32.xlu0 %v252, 96
      %v858 = vpop.permute.xlu0 %857
      %859 = vrot.lane.b32.xlu0 %v254, 96
      %v860 = vpop.permute.xlu0 %859
      %861 = vrot.lane.b32.xlu0 %v253, 96
      %v862 = vpop.permute.xlu0 %861
      %863 = vrot.lane.b32.xlu0 %v255, 96
      %v864 = vpop.permute.xlu0 %863
      %vm865 = vcmp.lt.s32.totalorder %v269, 96
      %v866 = vsel %vm865, %v858, %v862
      %v867 = vsel %vm865, %v860, %v864
      %v868 = vsel %vm865, %v862, %v858
      %v869 = vsel %vm865, %v864, %v860
      %vm870 = vcmp.ge.s32.totalorder %v256, 4294967294
      %vm871 = vcmp.lt.s32.totalorder %v256, 14
      %vm872 = vmand %vm870, %vm871
      %v873 = vsel %vm872, 1, 0
      %v874 = vlaneseq
      %v875 = vshrl.u32 %v874, 7
      %v876 = vsub.s32 0, %v875
      %v877 = vrot.slane %v873, %v876
      %v878 = vlaneseq
      %v879 = vshrl.u32 %v878, 7
      %v880 = vsub.s32 2, %v879
      %v881 = vrot.slane %v873, %v880
      %v882 = vlaneseq
      %v883 = vshrl.u32 %v882, 7
      %v884 = vsub.s32 0, %v883
      %v885 = vrot.slane %v877, %v884
      %v886 = vlaneseq
      %v887 = vshrl.u32 %v886, 7
      %v888 = vsub.s32 0, %v887
      %v889 = vrot.slane %v881, %v888
      %vm890 = vcmp.eq.s32.totalorder %v885, 1
      %vm891 = vcmp.eq.s32.totalorder %v889, 1
      %v892 = vsel %vm890, %v866, 0.0
      %v893 = vsel %vm891, %v868, 0.0
      %v894 = vsel %vm890, %v867, 0.0
      %v895 = vsel %vm891, %v869, 0.0
      %s896 = scalar_lea.vmem %s2, 80
      %v897 = vld [vmem:[%s896] sm:$0xff]
      %v898 = vld [vmem:[%s896 + $0x8] sm:$0xff]
      %v900 = vsel %vm303, %v897, 0
      %v903 = vsel %vm303, %v898, 0
      %905 = vmatprep.subr.mxu0 0.0
      %906 = vmatpush1.msra.mxu0 0.0
      %907 = vmatprep.subr.mxu0 0.0
      %908 = vmatpush1.msra.mxu0 0.0
      %909 = vmatprep.subr.mxu0 0.0
      %910 = vmatpush1.msra.mxu0 0.0
      %911 = vmatprep.subr.mxu0 0.0
      %912 = vmatpush1.msra.mxu0 0.0
      %913 = vmatprep.subr.mxu0 0.0
      %914 = vmatpush1.msra.mxu0 0.0
      %915 = vmatprep.subr.mxu0 0.0
      %916 = vmatpush1.msra.mxu0 0.0
      %917 = vmatprep.subr.mxu0 0.0
      %918 = vmatpush1.msra.mxu0 0.0
      %919 = vmatprep.subr.mxu0 0.0
      %920 = vmatpush1.msra.mxu0 0.0
      %921 = vmatprep.subr.mxu0 0.0
      %922 = vmatpush1.msra.mxu0 0.0
      %923 = vmatprep.subr.mxu0 0.0
      %924 = vmatpush1.msra.mxu0 0.0
      %925 = vmatprep.subr.mxu0 0.0
      %926 = vmatpush1.msra.mxu0 0.0
      %927 = vmatprep.subr.mxu0 0.0
      %928 = vmatpush1.msra.mxu0 0.0
      %929 = vmatprep.subr.mxu0 0.0
      %930 = vmatpush1.msra.mxu0 0.0
      %931 = vmatprep.subr.mxu0 0.0
      %932 = vmatpush1.msra.mxu0 0.0
      %933 = vmatprep.subr.mxu0 %v895
      %934 = vmatpush1.msra.mxu0 %v894
      %935 = vmatprep.subr.mxu0 %v893
      %936 = vmatpush1.msra.mxu0 %v892
      %937 = vmatprep.subr.mxu0 0.0
      %938 = vmatpush2.msra.mxu0 0.0
      %939 = vmatprep.subr.mxu0 0.0
      %940 = vmatpush2.msra.mxu0 0.0
      %941 = vmatprep.subr.mxu0 0.0
      %942 = vmatpush2.msra.mxu0 0.0
      %943 = vmatprep.subr.mxu0 0.0
      %944 = vmatpush2.msra.mxu0 0.0
      %945 = vmatprep.subr.mxu0 0.0
      %946 = vmatpush2.msra.mxu0 0.0
      %947 = vmatprep.subr.mxu0 0.0
      %948 = vmatpush2.msra.mxu0 0.0
      %949 = vmatprep.subr.mxu0 0.0
      %950 = vmatpush2.msra.mxu0 0.0
      %951 = vmatprep.subr.mxu0 0.0
      %952 = vmatpush2.msra.mxu0 0.0
      %953 = vmatprep.subr.mxu0 0.0
      %954 = vmatpush2.msra.mxu0 0.0
      %955 = vmatprep.subr.mxu0 0.0
      %956 = vmatpush2.msra.mxu0 0.0
      %957 = vmatprep.subr.mxu0 0.0
      %958 = vmatpush2.msra.mxu0 0.0
      %959 = vmatprep.subr.mxu0 0.0
      %960 = vmatpush2.msra.mxu0 0.0
      %961 = vmatprep.subr.mxu0 0.0
      %962 = vmatpush2.msra.mxu0 0.0
      %963 = vmatprep.subr.mxu0 0.0
      %964 = vmatpush2.msra.mxu0 0.0
      %965 = vmatprep.subr.mxu0 0.0
      %966 = vmatpush2.msra.mxu0 0.0
      %967 = vmatprep.subr.mxu0 0.0
      %968 = vmatpush2.msra.mxu0 0.0
      %969 = vmatprep.mubr.f32.mxu0 0.0
      %970 = vmatmul.mubr.f32.gmra.mxu0 %v900
      %v971 = vpop.f32.mrf.mxu0
      %v972 = vadd.f32 0.0, %v971
      %v973 = vpop.f32.mrf.mxu0
      %v974 = vadd.f32 0.0, %v973
      %975 = vmatprep.mubr.f32.mxu0 0.0
      %976 = vmatmul.mubr.f32.gmra.mxu0 %v903
      %v977 = vpop.f32.mrf.mxu0
      %v978 = vadd.f32 0.0, %v977
      %v979 = vpop.f32.mrf.mxu0
      %v980 = vadd.f32 0.0, %v979
      %981 = vdwg.mxu0
      %v982 = vadd.f32 %v853, %v972
      %v983 = vadd.f32 %v854, %v974
      %v984 = vadd.f32 %v855, %v978
      %v985 = vadd.f32 %v856, %v980
      %986 = vrot.lane.b32.xlu0 %v252, 80
      %v987 = vpop.permute.xlu0 %986
      %988 = vrot.lane.b32.xlu0 %v254, 80
      %v989 = vpop.permute.xlu0 %988
      %990 = vrot.lane.b32.xlu0 %v253, 80
      %v991 = vpop.permute.xlu0 %990
      %992 = vrot.lane.b32.xlu0 %v255, 80
      %v993 = vpop.permute.xlu0 %992
      %vm994 = vcmp.lt.s32.totalorder %v269, 80
      %v995 = vsel %vm994, %v987, %v991
      %v996 = vsel %vm994, %v989, %v993
      %v997 = vsel %vm994, %v991, %v987
      %v998 = vsel %vm994, %v993, %v989
      %vm999 = vcmp.ge.s32.totalorder %v256, 4294967293
      %vm1000 = vcmp.lt.s32.totalorder %v256, 13
      %vm1001 = vmand %vm999, %vm1000
      %v1002 = vsel %vm1001, 1, 0
      %v1003 = vlaneseq
      %v1004 = vshrl.u32 %v1003, 7
      %v1005 = vsub.s32 0, %v1004
      %v1006 = vrot.slane %v1002, %v1005
      %v1007 = vlaneseq
      %v1008 = vshrl.u32 %v1007, 7
      %v1009 = vsub.s32 2, %v1008
      %v1010 = vrot.slane %v1002, %v1009
      %v1011 = vlaneseq
      %v1012 = vshrl.u32 %v1011, 7
      %v1013 = vsub.s32 0, %v1012
      %v1014 = vrot.slane %v1006, %v1013
      %v1015 = vlaneseq
      %v1016 = vshrl.u32 %v1015, 7
      %v1017 = vsub.s32 0, %v1016
      %v1018 = vrot.slane %v1010, %v1017
      %vm1019 = vcmp.eq.s32.totalorder %v1014, 1
      %vm1020 = vcmp.eq.s32.totalorder %v1018, 1
      %v1021 = vsel %vm1019, %v995, 0.0
      %v1022 = vsel %vm1020, %v997, 0.0
      %v1023 = vsel %vm1019, %v996, 0.0
      %v1024 = vsel %vm1020, %v998, 0.0
      %s1025 = scalar_lea.vmem %s2, 96
      %v1026 = vld [vmem:[%s1025] sm:$0xff]
      %v1027 = vld [vmem:[%s1025 + $0x8] sm:$0xff]
      %v1029 = vsel %vm303, %v1026, 0
      %v1032 = vsel %vm303, %v1027, 0
      %1034 = vmatprep.subr.mxu0 0.0
      %1035 = vmatpush1.msra.mxu0 0.0
      %1036 = vmatprep.subr.mxu0 0.0
      %1037 = vmatpush1.msra.mxu0 0.0
      %1038 = vmatprep.subr.mxu0 0.0
      %1039 = vmatpush1.msra.mxu0 0.0
      %1040 = vmatprep.subr.mxu0 0.0
      %1041 = vmatpush1.msra.mxu0 0.0
      %1042 = vmatprep.subr.mxu0 0.0
      %1043 = vmatpush1.msra.mxu0 0.0
      %1044 = vmatprep.subr.mxu0 0.0
      %1045 = vmatpush1.msra.mxu0 0.0
      %1046 = vmatprep.subr.mxu0 0.0
      %1047 = vmatpush1.msra.mxu0 0.0
      %1048 = vmatprep.subr.mxu0 0.0
      %1049 = vmatpush1.msra.mxu0 0.0
      %1050 = vmatprep.subr.mxu0 0.0
      %1051 = vmatpush1.msra.mxu0 0.0
      %1052 = vmatprep.subr.mxu0 0.0
      %1053 = vmatpush1.msra.mxu0 0.0
      %1054 = vmatprep.subr.mxu0 0.0
      %1055 = vmatpush1.msra.mxu0 0.0
      %1056 = vmatprep.subr.mxu0 0.0
      %1057 = vmatpush1.msra.mxu0 0.0
      %1058 = vmatprep.subr.mxu0 0.0
      %1059 = vmatpush1.msra.mxu0 0.0
      %1060 = vmatprep.subr.mxu0 0.0
      %1061 = vmatpush1.msra.mxu0 0.0
      %1062 = vmatprep.subr.mxu0 %v1024
      %1063 = vmatpush1.msra.mxu0 %v1023
      %1064 = vmatprep.subr.mxu0 %v1022
      %1065 = vmatpush1.msra.mxu0 %v1021
      %1066 = vmatprep.subr.mxu0 0.0
      %1067 = vmatpush2.msra.mxu0 0.0
      %1068 = vmatprep.subr.mxu0 0.0
      %1069 = vmatpush2.msra.mxu0 0.0
      %1070 = vmatprep.subr.mxu0 0.0
      %1071 = vmatpush2.msra.mxu0 0.0
      %1072 = vmatprep.subr.mxu0 0.0
      %1073 = vmatpush2.msra.mxu0 0.0
      %1074 = vmatprep.subr.mxu0 0.0
      %1075 = vmatpush2.msra.mxu0 0.0
      %1076 = vmatprep.subr.mxu0 0.0
      %1077 = vmatpush2.msra.mxu0 0.0
      %1078 = vmatprep.subr.mxu0 0.0
      %1079 = vmatpush2.msra.mxu0 0.0
      %1080 = vmatprep.subr.mxu0 0.0
      %1081 = vmatpush2.msra.mxu0 0.0
      %1082 = vmatprep.subr.mxu0 0.0
      %1083 = vmatpush2.msra.mxu0 0.0
      %1084 = vmatprep.subr.mxu0 0.0
      %1085 = vmatpush2.msra.mxu0 0.0
      %1086 = vmatprep.subr.mxu0 0.0
      %1087 = vmatpush2.msra.mxu0 0.0
      %1088 = vmatprep.subr.mxu0 0.0
      %1089 = vmatpush2.msra.mxu0 0.0
      %1090 = vmatprep.subr.mxu0 0.0
      %1091 = vmatpush2.msra.mxu0 0.0
      %1092 = vmatprep.subr.mxu0 0.0
      %1093 = vmatpush2.msra.mxu0 0.0
      %1094 = vmatprep.subr.mxu0 0.0
      %1095 = vmatpush2.msra.mxu0 0.0
      %1096 = vmatprep.subr.mxu0 0.0
      %1097 = vmatpush2.msra.mxu0 0.0
      %1098 = vmatprep.mubr.f32.mxu0 0.0
      %1099 = vmatmul.mubr.f32.gmra.mxu0 %v1029
      %v1100 = vpop.f32.mrf.mxu0
      %v1101 = vadd.f32 0.0, %v1100
      %v1102 = vpop.f32.mrf.mxu0
      %v1103 = vadd.f32 0.0, %v1102
      %1104 = vmatprep.mubr.f32.mxu0 0.0
      %1105 = vmatmul.mubr.f32.gmra.mxu0 %v1032
      %v1106 = vpop.f32.mrf.mxu0
      %v1107 = vadd.f32 0.0, %v1106
      %v1108 = vpop.f32.mrf.mxu0
      %v1109 = vadd.f32 0.0, %v1108
      %1110 = vdwg.mxu0
      %v1111 = vadd.f32 %v982, %v1101
      %v1112 = vadd.f32 %v983, %v1103
      %v1113 = vadd.f32 %v984, %v1107
      %v1114 = vadd.f32 %v985, %v1109
      %v1115 = vld [vmem:[%s3] sm:$0xff]
      %v1116 = vld [vmem:[%s3 + $0x8] sm:$0xff]
      %1118 = vset.pattern.permute.xlu0 0
      %1119 = vperm.xlu0 %1118, %v1115
      %v1120 = vpop.permute.xlu0 %1119
      %1123 = vset.pattern.permute.xlu0 0
      %1124 = vperm.xlu0 %1123, %v1116
      %v1125 = vpop.permute.xlu0 %1124
      %v1127 = vadd.f32 %v1111, %v1120
      %v1128 = vadd.f32 %v1112, %v1120
      %v1129 = vadd.f32 %v1113, %v1125
      %v1130 = vadd.f32 %v1114, %v1125
      %s1131 = scalar_lea.vmem %s4, 24
      %v1132 = vld [vmem:[%s1131] sm:$0xff]
      %1133 = vrot.lane.b32.xlu0 %v1127, 3
      %v1134 = vpop.permute.xlu0 %1133
      %1135 = vrot.lane.b32.xlu0 %v1129, 3
      %v1136 = vpop.permute.xlu0 %1135
      %1137 = vrot.lane.b32.xlu0 %v1128, 3
      %v1138 = vpop.permute.xlu0 %1137
      %1139 = vrot.lane.b32.xlu0 %v1130, 3
      %v1140 = vpop.permute.xlu0 %1139
      %vm1141 = vcmp.lt.s32.totalorder %v269, 3
      %v1142 = vsel %vm1141, %v1134, %v1138
      %v1143 = vsel %vm1141, %v1136, %v1140
      %v1144 = vsel %vm1141, %v1138, %v1134
      %v1145 = vsel %vm1141, %v1140, %v1136
      %v1146 = vlaneseq
      %v1147 = vshrl.u32 %v1146, 7
      %v1148 = vsub.s32 1, %v1147
      %v1149 = vrot.slane %v278, %v1148
      %v1150 = vlaneseq
      %v1151 = vshrl.u32 %v1150, 7
      %v1152 = vsub.s32 3, %v1151
      %v1153 = vrot.slane %v278, %v1152
      %v1154 = vlaneseq
      %v1155 = vshrl.u32 %v1154, 7
      %v1156 = vsub.s32 1, %v1155
      %v1157 = vrot.slane %v1149, %v1156
      %v1158 = vlaneseq
      %v1159 = vshrl.u32 %v1158, 7
      %v1160 = vsub.s32 1, %v1159
      %v1161 = vrot.slane %v1153, %v1160
      %vm1162 = vcmp.eq.s32.totalorder %v1157, 1
      %vm1163 = vcmp.eq.s32.totalorder %v1161, 1
      %v1164 = vsel %vm1162, %v1144, 0.0
      %v1165 = vsel %vm1163, %v1142, 0.0
      %v1166 = vsel %vm1162, %v1145, 0.0
      %v1167 = vsel %vm1163, %v1143, 0.0
      %v1168 = vld [vmem:[%s4] sm:$0xff]
      %v1170 = vsel %vm303, %v1168, 0
      %1172 = vmatprep.subr.mxu0 0.0
      %1173 = vmatpush1.msra.mxu0 0.0
      %1174 = vmatprep.subr.mxu0 0.0
      %1175 = vmatpush1.msra.mxu0 0.0
      %1176 = vmatprep.subr.mxu0 0.0
      %1177 = vmatpush1.msra.mxu0 0.0
      %1178 = vmatprep.subr.mxu0 0.0
      %1179 = vmatpush1.msra.mxu0 0.0
      %1180 = vmatprep.subr.mxu0 0.0
      %1181 = vmatpush1.msra.mxu0 0.0
      %1182 = vmatprep.subr.mxu0 0.0
      %1183 = vmatpush1.msra.mxu0 0.0
      %1184 = vmatprep.subr.mxu0 0.0
      %1185 = vmatpush1.msra.mxu0 0.0
      %1186 = vmatprep.subr.mxu0 0.0
      %1187 = vmatpush1.msra.mxu0 0.0
      %1188 = vmatprep.subr.mxu0 0.0
      %1189 = vmatpush1.msra.mxu0 0.0
      %1190 = vmatprep.subr.mxu0 0.0
      %1191 = vmatpush1.msra.mxu0 0.0
      %1192 = vmatprep.subr.mxu0 0.0
      %1193 = vmatpush1.msra.mxu0 0.0
      %1194 = vmatprep.subr.mxu0 0.0
      %1195 = vmatpush1.msra.mxu0 0.0
      %1196 = vmatprep.subr.mxu0 0.0
      %1197 = vmatpush1.msra.mxu0 0.0
      %1198 = vmatprep.subr.mxu0 0.0
      %1199 = vmatpush1.msra.mxu0 0.0
      %1200 = vmatprep.subr.mxu0 %v1167
      %1201 = vmatpush1.msra.mxu0 %v1166
      %1202 = vmatprep.subr.mxu0 %v1165
      %1203 = vmatpush1.msra.mxu0 %v1164
      %1204 = vmatprep.subr.mxu0 0.0
      %1205 = vmatpush2.msra.mxu0 0.0
      %1206 = vmatprep.subr.mxu0 0.0
      %1207 = vmatpush2.msra.mxu0 0.0
      %1208 = vmatprep.subr.mxu0 0.0
      %1209 = vmatpush2.msra.mxu0 0.0
      %1210 = vmatprep.subr.mxu0 0.0
      %1211 = vmatpush2.msra.mxu0 0.0
      %1212 = vmatprep.subr.mxu0 0.0
      %1213 = vmatpush2.msra.mxu0 0.0
      %1214 = vmatprep.subr.mxu0 0.0
      %1215 = vmatpush2.msra.mxu0 0.0
      %1216 = vmatprep.subr.mxu0 0.0
      %1217 = vmatpush2.msra.mxu0 0.0
      %1218 = vmatprep.subr.mxu0 0.0
      %1219 = vmatpush2.msra.mxu0 0.0
      %1220 = vmatprep.subr.mxu0 0.0
      %1221 = vmatpush2.msra.mxu0 0.0
      %1222 = vmatprep.subr.mxu0 0.0
      %1223 = vmatpush2.msra.mxu0 0.0
      %1224 = vmatprep.subr.mxu0 0.0
      %1225 = vmatpush2.msra.mxu0 0.0
      %1226 = vmatprep.subr.mxu0 0.0
      %1227 = vmatpush2.msra.mxu0 0.0
      %1228 = vmatprep.subr.mxu0 0.0
      %1229 = vmatpush2.msra.mxu0 0.0
      %1230 = vmatprep.subr.mxu0 0.0
      %1231 = vmatpush2.msra.mxu0 0.0
      %1232 = vmatprep.subr.mxu0 0.0
      %1233 = vmatpush2.msra.mxu0 0.0
      %1234 = vmatprep.subr.mxu0 0.0
      %1235 = vmatpush2.msra.mxu0 0.0
      %1236 = vmatprep.mubr.f32.mxu0 0.0
      %1237 = vmatmul.mubr.f32.gmra.mxu0 %v1170
      %v1238 = vpop.f32.mrf.mxu0
      %v1239 = vadd.f32 0.0, %v1238
      %v1240 = vpop.f32.mrf.mxu0
      %v1241 = vadd.f32 0.0, %v1240
      %1242 = vdwg.mxu0
      %v1244 = vsel %vm303, %v1132, 0
      %1246 = vmatprep.subr.mxu0 0.0
      %1247 = vmatpush1.msra.mxu0 0.0
      %1248 = vmatprep.subr.mxu0 0.0
      %1249 = vmatpush1.msra.mxu0 0.0
      %1250 = vmatprep.subr.mxu0 0.0
      %1251 = vmatpush1.msra.mxu0 0.0
      %1252 = vmatprep.subr.mxu0 0.0
      %1253 = vmatpush1.msra.mxu0 0.0
      %1254 = vmatprep.subr.mxu0 0.0
      %1255 = vmatpush1.msra.mxu0 0.0
      %1256 = vmatprep.subr.mxu0 0.0
      %1257 = vmatpush1.msra.mxu0 0.0
      %1258 = vmatprep.subr.mxu0 0.0
      %1259 = vmatpush1.msra.mxu0 0.0
      %1260 = vmatprep.subr.mxu0 0.0
      %1261 = vmatpush1.msra.mxu0 0.0
      %1262 = vmatprep.subr.mxu0 0.0
      %1263 = vmatpush1.msra.mxu0 0.0
      %1264 = vmatprep.subr.mxu0 0.0
      %1265 = vmatpush1.msra.mxu0 0.0
      %1266 = vmatprep.subr.mxu0 0.0
      %1267 = vmatpush1.msra.mxu0 0.0
      %1268 = vmatprep.subr.mxu0 0.0
      %1269 = vmatpush1.msra.mxu0 0.0
      %1270 = vmatprep.subr.mxu0 0.0
      %1271 = vmatpush1.msra.mxu0 0.0
      %1272 = vmatprep.subr.mxu0 0.0
      %1273 = vmatpush1.msra.mxu0 0.0
      %1274 = vmatprep.subr.mxu0 %v1130
      %1275 = vmatpush1.msra.mxu0 %v1129
      %1276 = vmatprep.subr.mxu0 %v1128
      %1277 = vmatpush1.msra.mxu0 %v1127
      %1278 = vmatprep.subr.mxu0 0.0
      %1279 = vmatpush2.msra.mxu0 0.0
      %1280 = vmatprep.subr.mxu0 0.0
      %1281 = vmatpush2.msra.mxu0 0.0
      %1282 = vmatprep.subr.mxu0 0.0
      %1283 = vmatpush2.msra.mxu0 0.0
      %1284 = vmatprep.subr.mxu0 0.0
      %1285 = vmatpush2.msra.mxu0 0.0
      %1286 = vmatprep.subr.mxu0 0.0
      %1287 = vmatpush2.msra.mxu0 0.0
      %1288 = vmatprep.subr.mxu0 0.0
      %1289 = vmatpush2.msra.mxu0 0.0
      %1290 = vmatprep.subr.mxu0 0.0
      %1291 = vmatpush2.msra.mxu0 0.0
      %1292 = vmatprep.subr.mxu0 0.0
      %1293 = vmatpush2.msra.mxu0 0.0
      %1294 = vmatprep.subr.mxu0 0.0
      %1295 = vmatpush2.msra.mxu0 0.0
      %1296 = vmatprep.subr.mxu0 0.0
      %1297 = vmatpush2.msra.mxu0 0.0
      %1298 = vmatprep.subr.mxu0 0.0
      %1299 = vmatpush2.msra.mxu0 0.0
      %1300 = vmatprep.subr.mxu0 0.0
      %1301 = vmatpush2.msra.mxu0 0.0
      %1302 = vmatprep.subr.mxu0 0.0
      %1303 = vmatpush2.msra.mxu0 0.0
      %1304 = vmatprep.subr.mxu0 0.0
      %1305 = vmatpush2.msra.mxu0 0.0
      %1306 = vmatprep.subr.mxu0 0.0
      %1307 = vmatpush2.msra.mxu0 0.0
      %1308 = vmatprep.subr.mxu0 0.0
      %1309 = vmatpush2.msra.mxu0 0.0
      %1310 = vmatprep.mubr.f32.mxu0 0.0
      %1311 = vmatmul.mubr.f32.gmra.mxu0 %v1244
      %v1312 = vpop.f32.mrf.mxu0
      %v1313 = vadd.f32 %v1239, %v1312
      %v1314 = vpop.f32.mrf.mxu0
      %v1315 = vadd.f32 %v1241, %v1314
      %1316 = vdwg.mxu0
      %1317 = vrot.lane.b32.xlu0 %v1127, 2
      %v1318 = vpop.permute.xlu0 %1317
      %1319 = vrot.lane.b32.xlu0 %v1129, 2
      %v1320 = vpop.permute.xlu0 %1319
      %1321 = vrot.lane.b32.xlu0 %v1128, 2
      %v1322 = vpop.permute.xlu0 %1321
      %1323 = vrot.lane.b32.xlu0 %v1130, 2
      %v1324 = vpop.permute.xlu0 %1323
      %vm1325 = vcmp.lt.s32.totalorder %v269, 2
      %v1326 = vsel %vm1325, %v1318, %v1322
      %v1327 = vsel %vm1325, %v1320, %v1324
      %v1328 = vsel %vm1325, %v1322, %v1318
      %v1329 = vsel %vm1325, %v1324, %v1320
      %v1330 = vlaneseq
      %v1331 = vshrl.u32 %v1330, 7
      %v1332 = vsub.s32 1, %v1331
      %v1333 = vrot.slane %v486, %v1332
      %v1334 = vlaneseq
      %v1335 = vshrl.u32 %v1334, 7
      %v1336 = vsub.s32 3, %v1335
      %v1337 = vrot.slane %v486, %v1336
      %v1338 = vlaneseq
      %v1339 = vshrl.u32 %v1338, 7
      %v1340 = vsub.s32 1, %v1339
      %v1341 = vrot.slane %v1333, %v1340
      %v1342 = vlaneseq
      %v1343 = vshrl.u32 %v1342, 7
      %v1344 = vsub.s32 1, %v1343
      %v1345 = vrot.slane %v1337, %v1344
      %vm1346 = vcmp.eq.s32.totalorder %v1341, 1
      %vm1347 = vcmp.eq.s32.totalorder %v1345, 1
      %v1348 = vsel %vm1346, %v1328, 0.0
      %v1349 = vsel %vm1347, %v1326, 0.0
      %v1350 = vsel %vm1346, %v1329, 0.0
      %v1351 = vsel %vm1347, %v1327, 0.0
      %s1352 = scalar_lea.vmem %s4, 8
      %v1353 = vld [vmem:[%s1352] sm:$0xff]
      %v1355 = vsel %vm303, %v1353, 0
      %1357 = vmatprep.subr.mxu0 0.0
      %1358 = vmatpush1.msra.mxu0 0.0
      %1359 = vmatprep.subr.mxu0 0.0
      %1360 = vmatpush1.msra.mxu0 0.0
      %1361 = vmatprep.subr.mxu0 0.0
      %1362 = vmatpush1.msra.mxu0 0.0
      %1363 = vmatprep.subr.mxu0 0.0
      %1364 = vmatpush1.msra.mxu0 0.0
      %1365 = vmatprep.subr.mxu0 0.0
      %1366 = vmatpush1.msra.mxu0 0.0
      %1367 = vmatprep.subr.mxu0 0.0
      %1368 = vmatpush1.msra.mxu0 0.0
      %1369 = vmatprep.subr.mxu0 0.0
      %1370 = vmatpush1.msra.mxu0 0.0
      %1371 = vmatprep.subr.mxu0 0.0
      %1372 = vmatpush1.msra.mxu0 0.0
      %1373 = vmatprep.subr.mxu0 0.0
      %1374 = vmatpush1.msra.mxu0 0.0
      %1375 = vmatprep.subr.mxu0 0.0
      %1376 = vmatpush1.msra.mxu0 0.0
      %1377 = vmatprep.subr.mxu0 0.0
      %1378 = vmatpush1.msra.mxu0 0.0
      %1379 = vmatprep.subr.mxu0 0.0
      %1380 = vmatpush1.msra.mxu0 0.0
      %1381 = vmatprep.subr.mxu0 0.0
      %1382 = vmatpush1.msra.mxu0 0.0
      %1383 = vmatprep.subr.mxu0 0.0
      %1384 = vmatpush1.msra.mxu0 0.0
      %1385 = vmatprep.subr.mxu0 %v1351
      %1386 = vmatpush1.msra.mxu0 %v1350
      %1387 = vmatprep.subr.mxu0 %v1349
      %1388 = vmatpush1.msra.mxu0 %v1348
      %1389 = vmatprep.subr.mxu0 0.0
      %1390 = vmatpush2.msra.mxu0 0.0
      %1391 = vmatprep.subr.mxu0 0.0
      %1392 = vmatpush2.msra.mxu0 0.0
      %1393 = vmatprep.subr.mxu0 0.0
      %1394 = vmatpush2.msra.mxu0 0.0
      %1395 = vmatprep.subr.mxu0 0.0
      %1396 = vmatpush2.msra.mxu0 0.0
      %1397 = vmatprep.subr.mxu0 0.0
      %1398 = vmatpush2.msra.mxu0 0.0
      %1399 = vmatprep.subr.mxu0 0.0
      %1400 = vmatpush2.msra.mxu0 0.0
      %1401 = vmatprep.subr.mxu0 0.0
      %1402 = vmatpush2.msra.mxu0 0.0
      %1403 = vmatprep.subr.mxu0 0.0
      %1404 = vmatpush2.msra.mxu0 0.0
      %1405 = vmatprep.subr.mxu0 0.0
      %1406 = vmatpush2.msra.mxu0 0.0
      %1407 = vmatprep.subr.mxu0 0.0
      %1408 = vmatpush2.msra.mxu0 0.0
      %1409 = vmatprep.subr.mxu0 0.0
      %1410 = vmatpush2.msra.mxu0 0.0
      %1411 = vmatprep.subr.mxu0 0.0
      %1412 = vmatpush2.msra.mxu0 0.0
      %1413 = vmatprep.subr.mxu0 0.0
      %1414 = vmatpush2.msra.mxu0 0.0
      %1415 = vmatprep.subr.mxu0 0.0
      %1416 = vmatpush2.msra.mxu0 0.0
      %1417 = vmatprep.subr.mxu0 0.0
      %1418 = vmatpush2.msra.mxu0 0.0
      %1419 = vmatprep.subr.mxu0 0.0
      %1420 = vmatpush2.msra.mxu0 0.0
      %1421 = vmatprep.mubr.f32.mxu0 0.0
      %1422 = vmatmul.mubr.f32.gmra.mxu0 %v1355
      %v1423 = vpop.f32.mrf.mxu0
      %v1424 = vadd.f32 0.0, %v1423
      %v1425 = vpop.f32.mrf.mxu0
      %v1426 = vadd.f32 0.0, %v1425
      %1427 = vdwg.mxu0
      %v1428 = vadd.f32 %v1313, %v1424
      %v1429 = vadd.f32 %v1315, %v1426
      %1430 = vrot.lane.b32.xlu0 %v1127, 1
      %v1431 = vpop.permute.xlu0 %1430
      %1432 = vrot.lane.b32.xlu0 %v1129, 1
      %v1433 = vpop.permute.xlu0 %1432
      %1434 = vrot.lane.b32.xlu0 %v1128, 1
      %v1435 = vpop.permute.xlu0 %1434
      %1436 = vrot.lane.b32.xlu0 %v1130, 1
      %v1437 = vpop.permute.xlu0 %1436
      %vm1438 = vcmp.lt.s32.totalorder %v269, 1
      %v1439 = vsel %vm1438, %v1431, %v1435
      %v1440 = vsel %vm1438, %v1433, %v1437
      %v1441 = vsel %vm1438, %v1435, %v1431
      %v1442 = vsel %vm1438, %v1437, %v1433
      %v1443 = vlaneseq
      %v1444 = vshrl.u32 %v1443, 7
      %v1445 = vsub.s32 1, %v1444
      %v1446 = vrot.slane %v615, %v1445
      %v1447 = vlaneseq
      %v1448 = vshrl.u32 %v1447, 7
      %v1449 = vsub.s32 3, %v1448
      %v1450 = vrot.slane %v615, %v1449
      %v1451 = vlaneseq
      %v1452 = vshrl.u32 %v1451, 7
      %v1453 = vsub.s32 1, %v1452
      %v1454 = vrot.slane %v1446, %v1453
      %v1455 = vlaneseq
      %v1456 = vshrl.u32 %v1455, 7
      %v1457 = vsub.s32 1, %v1456
      %v1458 = vrot.slane %v1450, %v1457
      %vm1459 = vcmp.eq.s32.totalorder %v1454, 1
      %vm1460 = vcmp.eq.s32.totalorder %v1458, 1
      %v1461 = vsel %vm1459, %v1441, 0.0
      %v1462 = vsel %vm1460, %v1439, 0.0
      %v1463 = vsel %vm1459, %v1442, 0.0
      %v1464 = vsel %vm1460, %v1440, 0.0
      %s1465 = scalar_lea.vmem %s4, 16
      %v1466 = vld [vmem:[%s1465] sm:$0xff]
      %v1468 = vsel %vm303, %v1466, 0
      %1470 = vmatprep.subr.mxu0 0.0
      %1471 = vmatpush1.msra.mxu0 0.0
      %1472 = vmatprep.subr.mxu0 0.0
      %1473 = vmatpush1.msra.mxu0 0.0
      %1474 = vmatprep.subr.mxu0 0.0
      %1475 = vmatpush1.msra.mxu0 0.0
      %1476 = vmatprep.subr.mxu0 0.0
      %1477 = vmatpush1.msra.mxu0 0.0
      %1478 = vmatprep.subr.mxu0 0.0
      %1479 = vmatpush1.msra.mxu0 0.0
      %1480 = vmatprep.subr.mxu0 0.0
      %1481 = vmatpush1.msra.mxu0 0.0
      %1482 = vmatprep.subr.mxu0 0.0
      %1483 = vmatpush1.msra.mxu0 0.0
      %1484 = vmatprep.subr.mxu0 0.0
      %1485 = vmatpush1.msra.mxu0 0.0
      %1486 = vmatprep.subr.mxu0 0.0
      %1487 = vmatpush1.msra.mxu0 0.0
      %1488 = vmatprep.subr.mxu0 0.0
      %1489 = vmatpush1.msra.mxu0 0.0
      %1490 = vmatprep.subr.mxu0 0.0
      %1491 = vmatpush1.msra.mxu0 0.0
      %1492 = vmatprep.subr.mxu0 0.0
      %1493 = vmatpush1.msra.mxu0 0.0
      %1494 = vmatprep.subr.mxu0 0.0
      %1495 = vmatpush1.msra.mxu0 0.0
      %1496 = vmatprep.subr.mxu0 0.0
      %1497 = vmatpush1.msra.mxu0 0.0
      %1498 = vmatprep.subr.mxu0 %v1464
      %1499 = vmatpush1.msra.mxu0 %v1463
      %1500 = vmatprep.subr.mxu0 %v1462
      %1501 = vmatpush1.msra.mxu0 %v1461
      %1502 = vmatprep.subr.mxu0 0.0
      %1503 = vmatpush2.msra.mxu0 0.0
      %1504 = vmatprep.subr.mxu0 0.0
      %1505 = vmatpush2.msra.mxu0 0.0
      %1506 = vmatprep.subr.mxu0 0.0
      %1507 = vmatpush2.msra.mxu0 0.0
      %1508 = vmatprep.subr.mxu0 0.0
      %1509 = vmatpush2.msra.mxu0 0.0
      %1510 = vmatprep.subr.mxu0 0.0
      %1511 = vmatpush2.msra.mxu0 0.0
      %1512 = vmatprep.subr.mxu0 0.0
      %1513 = vmatpush2.msra.mxu0 0.0
      %1514 = vmatprep.subr.mxu0 0.0
      %1515 = vmatpush2.msra.mxu0 0.0
      %1516 = vmatprep.subr.mxu0 0.0
      %1517 = vmatpush2.msra.mxu0 0.0
      %1518 = vmatprep.subr.mxu0 0.0
      %1519 = vmatpush2.msra.mxu0 0.0
      %1520 = vmatprep.subr.mxu0 0.0
      %1521 = vmatpush2.msra.mxu0 0.0
      %1522 = vmatprep.subr.mxu0 0.0
      %1523 = vmatpush2.msra.mxu0 0.0
      %1524 = vmatprep.subr.mxu0 0.0
      %1525 = vmatpush2.msra.mxu0 0.0
      %1526 = vmatprep.subr.mxu0 0.0
      %1527 = vmatpush2.msra.mxu0 0.0
      %1528 = vmatprep.subr.mxu0 0.0
      %1529 = vmatpush2.msra.mxu0 0.0
      %1530 = vmatprep.subr.mxu0 0.0
      %1531 = vmatpush2.msra.mxu0 0.0
      %1532 = vmatprep.subr.mxu0 0.0
      %1533 = vmatpush2.msra.mxu0 0.0
      %1534 = vmatprep.mubr.f32.mxu0 0.0
      %1535 = vmatmul.mubr.f32.gmra.mxu0 %v1468
      %v1536 = vpop.f32.mrf.mxu0
      %v1537 = vadd.f32 0.0, %v1536
      %v1538 = vpop.f32.mrf.mxu0
      %v1539 = vadd.f32 0.0, %v1538
      %1540 = vdwg.mxu0
      %v1541 = vadd.f32 %v1428, %v1537
      %v1542 = vadd.f32 %v1429, %v1539
      %1543 = vrot.lane.b32.xlu0 %v1127, 127
      %v1544 = vpop.permute.xlu0 %1543
      %1545 = vrot.lane.b32.xlu0 %v1129, 127
      %v1546 = vpop.permute.xlu0 %1545
      %1547 = vrot.lane.b32.xlu0 %v1128, 127
      %v1548 = vpop.permute.xlu0 %1547
      %1549 = vrot.lane.b32.xlu0 %v1130, 127
      %v1550 = vpop.permute.xlu0 %1549
      %vm1551 = vcmp.lt.s32.totalorder %v269, 127
      %v1552 = vsel %vm1551, %v1544, %v1548
      %v1553 = vsel %vm1551, %v1546, %v1550
      %v1554 = vsel %vm1551, %v1548, %v1544
      %v1555 = vsel %vm1551, %v1550, %v1546
      %v1556 = vlaneseq
      %v1557 = vshrl.u32 %v1556, 7
      %v1558 = vsub.s32 1, %v1557
      %v1559 = vrot.slane %v744, %v1558
      %v1560 = vlaneseq
      %v1561 = vshrl.u32 %v1560, 7
      %v1562 = vsub.s32 3, %v1561
      %v1563 = vrot.slane %v744, %v1562
      %v1564 = vlaneseq
      %v1565 = vshrl.u32 %v1564, 7
      %v1566 = vsub.s32 1, %v1565
      %v1567 = vrot.slane %v1559, %v1566
      %v1568 = vlaneseq
      %v1569 = vshrl.u32 %v1568, 7
      %v1570 = vsub.s32 1, %v1569
      %v1571 = vrot.slane %v1563, %v1570
      %vm1572 = vcmp.eq.s32.totalorder %v1567, 1
      %vm1573 = vcmp.eq.s32.totalorder %v1571, 1
      %v1574 = vsel %vm1572, %v1552, 0.0
      %v1575 = vsel %vm1573, %v1554, 0.0
      %v1576 = vsel %vm1572, %v1553, 0.0
      %v1577 = vsel %vm1573, %v1555, 0.0
      %s1578 = scalar_lea.vmem %s4, 32
      %v1579 = vld [vmem:[%s1578] sm:$0xff]
      %v1581 = vsel %vm303, %v1579, 0
      %1583 = vmatprep.subr.mxu0 0.0
      %1584 = vmatpush1.msra.mxu0 0.0
      %1585 = vmatprep.subr.mxu0 0.0
      %1586 = vmatpush1.msra.mxu0 0.0
      %1587 = vmatprep.subr.mxu0 0.0
      %1588 = vmatpush1.msra.mxu0 0.0
      %1589 = vmatprep.subr.mxu0 0.0
      %1590 = vmatpush1.msra.mxu0 0.0
      %1591 = vmatprep.subr.mxu0 0.0
      %1592 = vmatpush1.msra.mxu0 0.0
      %1593 = vmatprep.subr.mxu0 0.0
      %1594 = vmatpush1.msra.mxu0 0.0
      %1595 = vmatprep.subr.mxu0 0.0
      %1596 = vmatpush1.msra.mxu0 0.0
      %1597 = vmatprep.subr.mxu0 0.0
      %1598 = vmatpush1.msra.mxu0 0.0
      %1599 = vmatprep.subr.mxu0 0.0
      %1600 = vmatpush1.msra.mxu0 0.0
      %1601 = vmatprep.subr.mxu0 0.0
      %1602 = vmatpush1.msra.mxu0 0.0
      %1603 = vmatprep.subr.mxu0 0.0
      %1604 = vmatpush1.msra.mxu0 0.0
      %1605 = vmatprep.subr.mxu0 0.0
      %1606 = vmatpush1.msra.mxu0 0.0
      %1607 = vmatprep.subr.mxu0 0.0
      %1608 = vmatpush1.msra.mxu0 0.0
      %1609 = vmatprep.subr.mxu0 0.0
      %1610 = vmatpush1.msra.mxu0 0.0
      %1611 = vmatprep.subr.mxu0 %v1577
      %1612 = vmatpush1.msra.mxu0 %v1576
      %1613 = vmatprep.subr.mxu0 %v1575
      %1614 = vmatpush1.msra.mxu0 %v1574
      %1615 = vmatprep.subr.mxu0 0.0
      %1616 = vmatpush2.msra.mxu0 0.0
      %1617 = vmatprep.subr.mxu0 0.0
      %1618 = vmatpush2.msra.mxu0 0.0
      %1619 = vmatprep.subr.mxu0 0.0
      %1620 = vmatpush2.msra.mxu0 0.0
      %1621 = vmatprep.subr.mxu0 0.0
      %1622 = vmatpush2.msra.mxu0 0.0
      %1623 = vmatprep.subr.mxu0 0.0
      %1624 = vmatpush2.msra.mxu0 0.0
      %1625 = vmatprep.subr.mxu0 0.0
      %1626 = vmatpush2.msra.mxu0 0.0
      %1627 = vmatprep.subr.mxu0 0.0
      %1628 = vmatpush2.msra.mxu0 0.0
      %1629 = vmatprep.subr.mxu0 0.0
      %1630 = vmatpush2.msra.mxu0 0.0
      %1631 = vmatprep.subr.mxu0 0.0
      %1632 = vmatpush2.msra.mxu0 0.0
      %1633 = vmatprep.subr.mxu0 0.0
      %1634 = vmatpush2.msra.mxu0 0.0
      %1635 = vmatprep.subr.mxu0 0.0
      %1636 = vmatpush2.msra.mxu0 0.0
      %1637 = vmatprep.subr.mxu0 0.0
      %1638 = vmatpush2.msra.mxu0 0.0
      %1639 = vmatprep.subr.mxu0 0.0
      %1640 = vmatpush2.msra.mxu0 0.0
      %1641 = vmatprep.subr.mxu0 0.0
      %1642 = vmatpush2.msra.mxu0 0.0
      %1643 = vmatprep.subr.mxu0 0.0
      %1644 = vmatpush2.msra.mxu0 0.0
      %1645 = vmatprep.subr.mxu0 0.0
      %1646 = vmatpush2.msra.mxu0 0.0
      %1647 = vmatprep.mubr.f32.mxu0 0.0
      %1648 = vmatmul.mubr.f32.gmra.mxu0 %v1581
      %v1649 = vpop.f32.mrf.mxu0
      %v1650 = vadd.f32 0.0, %v1649
      %v1651 = vpop.f32.mrf.mxu0
      %v1652 = vadd.f32 0.0, %v1651
      %1653 = vdwg.mxu0
      %v1654 = vadd.f32 %v1541, %v1650
      %v1655 = vadd.f32 %v1542, %v1652
      %1656 = vrot.lane.b32.xlu0 %v1127, 126
      %v1657 = vpop.permute.xlu0 %1656
      %1658 = vrot.lane.b32.xlu0 %v1129, 126
      %v1659 = vpop.permute.xlu0 %1658
      %1660 = vrot.lane.b32.xlu0 %v1128, 126
      %v1661 = vpop.permute.xlu0 %1660
      %1662 = vrot.lane.b32.xlu0 %v1130, 126
      %v1663 = vpop.permute.xlu0 %1662
      %vm1664 = vcmp.lt.s32.totalorder %v269, 126
      %v1665 = vsel %vm1664, %v1657, %v1661
      %v1666 = vsel %vm1664, %v1659, %v1663
      %v1667 = vsel %vm1664, %v1661, %v1657
      %v1668 = vsel %vm1664, %v1663, %v1659
      %v1669 = vlaneseq
      %v1670 = vshrl.u32 %v1669, 7
      %v1671 = vsub.s32 1, %v1670
      %v1672 = vrot.slane %v873, %v1671
      %v1673 = vlaneseq
      %v1674 = vshrl.u32 %v1673, 7
      %v1675 = vsub.s32 3, %v1674
      %v1676 = vrot.slane %v873, %v1675
      %v1677 = vlaneseq
      %v1678 = vshrl.u32 %v1677, 7
      %v1679 = vsub.s32 1, %v1678
      %v1680 = vrot.slane %v1672, %v1679
      %v1681 = vlaneseq
      %v1682 = vshrl.u32 %v1681, 7
      %v1683 = vsub.s32 1, %v1682
      %v1684 = vrot.slane %v1676, %v1683
      %vm1685 = vcmp.eq.s32.totalorder %v1680, 1
      %vm1686 = vcmp.eq.s32.totalorder %v1684, 1
      %v1687 = vsel %vm1685, %v1665, 0.0
      %v1688 = vsel %vm1686, %v1667, 0.0
      %v1689 = vsel %vm1685, %v1666, 0.0
      %v1690 = vsel %vm1686, %v1668, 0.0
      %s1691 = scalar_lea.vmem %s4, 40
      %v1692 = vld [vmem:[%s1691] sm:$0xff]
      %v1694 = vsel %vm303, %v1692, 0
      %1696 = vmatprep.subr.mxu0 0.0
      %1697 = vmatpush1.msra.mxu0 0.0
      %1698 = vmatprep.subr.mxu0 0.0
      %1699 = vmatpush1.msra.mxu0 0.0
      %1700 = vmatprep.subr.mxu0 0.0
      %1701 = vmatpush1.msra.mxu0 0.0
      %1702 = vmatprep.subr.mxu0 0.0
      %1703 = vmatpush1.msra.mxu0 0.0
      %1704 = vmatprep.subr.mxu0 0.0
      %1705 = vmatpush1.msra.mxu0 0.0
      %1706 = vmatprep.subr.mxu0 0.0
      %1707 = vmatpush1.msra.mxu0 0.0
      %1708 = vmatprep.subr.mxu0 0.0
      %1709 = vmatpush1.msra.mxu0 0.0
      %1710 = vmatprep.subr.mxu0 0.0
      %1711 = vmatpush1.msra.mxu0 0.0
      %1712 = vmatprep.subr.mxu0 0.0
      %1713 = vmatpush1.msra.mxu0 0.0
      %1714 = vmatprep.subr.mxu0 0.0
      %1715 = vmatpush1.msra.mxu0 0.0
      %1716 = vmatprep.subr.mxu0 0.0
      %1717 = vmatpush1.msra.mxu0 0.0
      %1718 = vmatprep.subr.mxu0 0.0
      %1719 = vmatpush1.msra.mxu0 0.0
      %1720 = vmatprep.subr.mxu0 0.0
      %1721 = vmatpush1.msra.mxu0 0.0
      %1722 = vmatprep.subr.mxu0 0.0
      %1723 = vmatpush1.msra.mxu0 0.0
      %1724 = vmatprep.subr.mxu0 %v1690
      %1725 = vmatpush1.msra.mxu0 %v1689
      %1726 = vmatprep.subr.mxu0 %v1688
      %1727 = vmatpush1.msra.mxu0 %v1687
      %1728 = vmatprep.subr.mxu0 0.0
      %1729 = vmatpush2.msra.mxu0 0.0
      %1730 = vmatprep.subr.mxu0 0.0
      %1731 = vmatpush2.msra.mxu0 0.0
      %1732 = vmatprep.subr.mxu0 0.0
      %1733 = vmatpush2.msra.mxu0 0.0
      %1734 = vmatprep.subr.mxu0 0.0
      %1735 = vmatpush2.msra.mxu0 0.0
      %1736 = vmatprep.subr.mxu0 0.0
      %1737 = vmatpush2.msra.mxu0 0.0
      %1738 = vmatprep.subr.mxu0 0.0
      %1739 = vmatpush2.msra.mxu0 0.0
      %1740 = vmatprep.subr.mxu0 0.0
      %1741 = vmatpush2.msra.mxu0 0.0
      %1742 = vmatprep.subr.mxu0 0.0
      %1743 = vmatpush2.msra.mxu0 0.0
      %1744 = vmatprep.subr.mxu0 0.0
      %1745 = vmatpush2.msra.mxu0 0.0
      %1746 = vmatprep.subr.mxu0 0.0
      %1747 = vmatpush2.msra.mxu0 0.0
      %1748 = vmatprep.subr.mxu0 0.0
      %1749 = vmatpush2.msra.mxu0 0.0
      %1750 = vmatprep.subr.mxu0 0.0
      %1751 = vmatpush2.msra.mxu0 0.0
      %1752 = vmatprep.subr.mxu0 0.0
      %1753 = vmatpush2.msra.mxu0 0.0
      %1754 = vmatprep.subr.mxu0 0.0
      %1755 = vmatpush2.msra.mxu0 0.0
      %1756 = vmatprep.subr.mxu0 0.0
      %1757 = vmatpush2.msra.mxu0 0.0
      %1758 = vmatprep.subr.mxu0 0.0
      %1759 = vmatpush2.msra.mxu0 0.0
      %1760 = vmatprep.mubr.f32.mxu0 0.0
      %1761 = vmatmul.mubr.f32.gmra.mxu0 %v1694
      %v1762 = vpop.f32.mrf.mxu0
      %v1763 = vadd.f32 0.0, %v1762
      %v1764 = vpop.f32.mrf.mxu0
      %v1765 = vadd.f32 0.0, %v1764
      %1766 = vdwg.mxu0
      %v1767 = vadd.f32 %v1654, %v1763
      %v1768 = vadd.f32 %v1655, %v1765
      %1769 = vrot.lane.b32.xlu0 %v1127, 125
      %v1770 = vpop.permute.xlu0 %1769
      %1771 = vrot.lane.b32.xlu0 %v1129, 125
      %v1772 = vpop.permute.xlu0 %1771
      %1773 = vrot.lane.b32.xlu0 %v1128, 125
      %v1774 = vpop.permute.xlu0 %1773
      %1775 = vrot.lane.b32.xlu0 %v1130, 125
      %v1776 = vpop.permute.xlu0 %1775
      %vm1777 = vcmp.lt.s32.totalorder %v269, 125
      %v1778 = vsel %vm1777, %v1770, %v1774
      %v1779 = vsel %vm1777, %v1772, %v1776
      %v1780 = vsel %vm1777, %v1774, %v1770
      %v1781 = vsel %vm1777, %v1776, %v1772
      %v1782 = vlaneseq
      %v1783 = vshrl.u32 %v1782, 7
      %v1784 = vsub.s32 1, %v1783
      %v1785 = vrot.slane %v1002, %v1784
      %v1786 = vlaneseq
      %v1787 = vshrl.u32 %v1786, 7
      %v1788 = vsub.s32 3, %v1787
      %v1789 = vrot.slane %v1002, %v1788
      %v1790 = vlaneseq
      %v1791 = vshrl.u32 %v1790, 7
      %v1792 = vsub.s32 1, %v1791
      %v1793 = vrot.slane %v1785, %v1792
      %v1794 = vlaneseq
      %v1795 = vshrl.u32 %v1794, 7
      %v1796 = vsub.s32 1, %v1795
      %v1797 = vrot.slane %v1789, %v1796
      %vm1798 = vcmp.eq.s32.totalorder %v1793, 1
      %vm1799 = vcmp.eq.s32.totalorder %v1797, 1
      %v1800 = vsel %vm1798, %v1778, 0.0
      %v1801 = vsel %vm1799, %v1780, 0.0
      %v1802 = vsel %vm1798, %v1779, 0.0
      %v1803 = vsel %vm1799, %v1781, 0.0
      %s1804 = scalar_lea.vmem %s4, 48
      %v1805 = vld [vmem:[%s1804] sm:$0xff]
      %v1807 = vsel %vm303, %v1805, 0
      %1809 = vmatprep.subr.mxu0 0.0
      %1810 = vmatpush1.msra.mxu0 0.0
      %1811 = vmatprep.subr.mxu0 0.0
      %1812 = vmatpush1.msra.mxu0 0.0
      %1813 = vmatprep.subr.mxu0 0.0
      %1814 = vmatpush1.msra.mxu0 0.0
      %1815 = vmatprep.subr.mxu0 0.0
      %1816 = vmatpush1.msra.mxu0 0.0
      %1817 = vmatprep.subr.mxu0 0.0
      %1818 = vmatpush1.msra.mxu0 0.0
      %1819 = vmatprep.subr.mxu0 0.0
      %1820 = vmatpush1.msra.mxu0 0.0
      %1821 = vmatprep.subr.mxu0 0.0
      %1822 = vmatpush1.msra.mxu0 0.0
      %1823 = vmatprep.subr.mxu0 0.0
      %1824 = vmatpush1.msra.mxu0 0.0
      %1825 = vmatprep.subr.mxu0 0.0
      %1826 = vmatpush1.msra.mxu0 0.0
      %1827 = vmatprep.subr.mxu0 0.0
      %1828 = vmatpush1.msra.mxu0 0.0
      %1829 = vmatprep.subr.mxu0 0.0
      %1830 = vmatpush1.msra.mxu0 0.0
      %1831 = vmatprep.subr.mxu0 0.0
      %1832 = vmatpush1.msra.mxu0 0.0
      %1833 = vmatprep.subr.mxu0 0.0
      %1834 = vmatpush1.msra.mxu0 0.0
      %1835 = vmatprep.subr.mxu0 0.0
      %1836 = vmatpush1.msra.mxu0 0.0
      %1837 = vmatprep.subr.mxu0 %v1803
      %1838 = vmatpush1.msra.mxu0 %v1802
      %1839 = vmatprep.subr.mxu0 %v1801
      %1840 = vmatpush1.msra.mxu0 %v1800
      %1841 = vmatprep.subr.mxu0 0.0
      %1842 = vmatpush2.msra.mxu0 0.0
      %1843 = vmatprep.subr.mxu0 0.0
      %1844 = vmatpush2.msra.mxu0 0.0
      %1845 = vmatprep.subr.mxu0 0.0
      %1846 = vmatpush2.msra.mxu0 0.0
      %1847 = vmatprep.subr.mxu0 0.0
      %1848 = vmatpush2.msra.mxu0 0.0
      %1849 = vmatprep.subr.mxu0 0.0
      %1850 = vmatpush2.msra.mxu0 0.0
      %1851 = vmatprep.subr.mxu0 0.0
      %1852 = vmatpush2.msra.mxu0 0.0
      %1853 = vmatprep.subr.mxu0 0.0
      %1854 = vmatpush2.msra.mxu0 0.0
      %1855 = vmatprep.subr.mxu0 0.0
      %1856 = vmatpush2.msra.mxu0 0.0
      %1857 = vmatprep.subr.mxu0 0.0
      %1858 = vmatpush2.msra.mxu0 0.0
      %1859 = vmatprep.subr.mxu0 0.0
      %1860 = vmatpush2.msra.mxu0 0.0
      %1861 = vmatprep.subr.mxu0 0.0
      %1862 = vmatpush2.msra.mxu0 0.0
      %1863 = vmatprep.subr.mxu0 0.0
      %1864 = vmatpush2.msra.mxu0 0.0
      %1865 = vmatprep.subr.mxu0 0.0
      %1866 = vmatpush2.msra.mxu0 0.0
      %1867 = vmatprep.subr.mxu0 0.0
      %1868 = vmatpush2.msra.mxu0 0.0
      %1869 = vmatprep.subr.mxu0 0.0
      %1870 = vmatpush2.msra.mxu0 0.0
      %1871 = vmatprep.subr.mxu0 0.0
      %1872 = vmatpush2.msra.mxu0 0.0
      %1873 = vmatprep.mubr.f32.mxu0 0.0
      %1874 = vmatmul.mubr.f32.gmra.mxu0 %v1807
      %v1875 = vpop.f32.mrf.mxu0
      %v1876 = vadd.f32 0.0, %v1875
      %v1877 = vpop.f32.mrf.mxu0
      %v1878 = vadd.f32 0.0, %v1877
      %1879 = vdwg.mxu0
      %v1880 = vadd.f32 %v1767, %v1876
      %v1881 = vadd.f32 %v1768, %v1878
      %v1882 = vld [vmem:[%s5] sm:$0xff]
      %1884 = vset.pattern.permute.xlu0 0
      %1885 = vperm.xlu0 %1884, %v1882
      %v1886 = vpop.permute.xlu0 %1885
      %v1888 = vadd.f32 %v1880, %v1886
      %v1889 = vadd.f32 %v1881, %v1886
      %1890 = vst [vmem:[%s251] sm:$0xff] %v1888
      %1891 = vst [vmem:[%s251 + $0x8] sm:$0xff] %v1889
      %p1892 = scmp.lt.s32.totalorder %s17, 1
      %s1893 = scalar_select %p1892, %s17, 1
      %s1894 = smul.addr %s1893, 2
      %s1895 = smul.addr %s1894, 8
      %s1896 = scalar_lea.vmem %s6, %s1895
      // Predicated region
      $region45: #{gcn_forward.1} parent=43 // pred_check
        %p1897 = pneg %p166
      $region46: #{gcn_forward.1} parent=43 // pred_check_branch
        %1899 = sbr.rel (%p1897) target = $region48
      $region47: #{gcn_forward.1} parent=43 // pred_region
        _
      $region48: #{gcn_forward.1} parent=43 // pred_fallthru
        _
    $region44: #{gcn_forward.1} parent=5 // pred_fallthru
      _
    %p1900 = scmp.le.s32.totalorder 2, %s12
    // Predicated region
    $region49: #{gcn_forward.1} parent=5 // pred_check
      %p1901 = pneg %p1900
    $region50: #{gcn_forward.1} parent=5 // pred_check_branch
      %1903 = sbr.rel (%p1901) target = $region52
    $region51: #{gcn_forward.1} parent=5 // pred_region
      %s1904 = ssub.s32 %s12, 2
      // Predicated region
      $region53: #{gcn_forward.1} parent=51 // pred_check
        %p1905 = pneg %p172
      $region54: #{gcn_forward.1} parent=51 // pred_check_branch
        %1907 = sbr.rel (%p1905) target = $region56
      $region55: #{gcn_forward.1} parent=51 // pred_region
        %p1908 = scmp.lt.s32.totalorder %s18, 1
        %s1909 = scalar_select %p1908, %s18, 1
        %s1910 = smul.addr %s1909, 2
        %s1911 = smul.addr %s1910, 8
        %s1912 = scalar_lea.vmem %s6, %s1911
      $region56: #{gcn_forward.1} parent=51 // pred_fallthru
        _
    $region52: #{gcn_forward.1} parent=5 // pred_fallthru
      _
  $region6: #{gcn_forward.1} parent=0 // loop_footer
    %s16 = sadd.s32 1, %s12
  $region7: #{gcn_forward.1} parent=0 // loop_footer_branch
    %11 = sbr.rel target = $region3
  $region8: #{gcn_forward.1} parent=0 // loop_exit
    _

</llo_original>
